<compile_context>
chip_gen: v7x
topology: tpu7x:2x2x1
jax: 0.10.0
libtpu: 0.0.40
codegen_flags: <defaults>
</compile_context>

<pallas_src>
import functools

import jax
import jax.numpy as jnp
import numpy as np
from jax.experimental import pallas as pl
from jax.experimental.pallas import tpu as pltpu


def _lstm_kernel(e_ref, wih_ref, whh_ref, bias_ref, z_ref, c_out_ref,
                 *, batch, seq, n_embed, hidden):
    """Fused input projection + serial h/c recurrence.

    e_ref    : (B, T*E)  embeddings, lane-dense per batch row (free reshape).
    wih_ref  : (E, 4H)   input weight (transposed), f32.
    whh_ref  : (H, 4H)   recurrent weight (transposed), f32.
    bias_ref : (1, 4H)   b_ih + b_hh, f32.
    z_ref    : (B, T*H)  per-step hidden states, lane-dense, single writeback.
    c_out_ref: (B, H)    final cell state (h_T is recovered from z in wrapper).
    """
    B, T, E, H = batch, seq, n_embed, hidden

    e_all = e_ref[...]                                    # (B, T*E) f32
    wih = wih_ref[...]                                    # (E, 4H)  f32
    whh_bf = whh_ref[...].astype(jnp.bfloat16)            # cast ONCE, outside loop
    bias_b = jnp.broadcast_to(bias_ref[...], (B, 4 * H))  # hoisted broadcast

    # --- Prologue: input projection for every timestep, fused in-kernel. ---
    # No dependency on h, so these MXU ops sit off the serial critical path and
    # overlap with the recurrence below; gx lives entirely in VMEM/vregs
    # (no HBM round trip, no extra XLA dispatch).  Kept f32 for accuracy — the
    # cost is hidden under the serial chain.
    gx = [
        jnp.dot(e_all[:, t * E:(t + 1) * E], wih,
                preferred_element_type=jnp.float32) + bias_b       # (B, 4H)
        for t in range(T)
    ]

    # --- Serial recurrence (the critical path): T steps, fully unrolled. ---
    h = jnp.zeros((B, H), jnp.float32)                    # hx=None -> zero init
    c = jnp.zeros((B, H), jnp.float32)
    hs = []
    for t in range(T):
        # bf16 operands -> single MXU pass per step; f32 accumulation.
        gates = gx[t] + jnp.dot(h.astype(jnp.bfloat16), whh_bf,
                                preferred_element_type=jnp.float32)  # (B, 4H)

        sg = jax.nn.sigmoid(gates)                        # 1 EUP push: i, f, o
        i_g = sg[:, 0 * H:1 * H]
        f_g = sg[:, 1 * H:2 * H]
        o_g = sg[:, 3 * H:4 * H]
        g_g = jnp.tanh(gates[:, 2 * H:3 * H])             # 1 EUP push: g

        c = f_g * c + i_g * g_g
        h = o_g * jnp.tanh(c)                             # 1 EUP push
        hs.append(h)

    # Coalesced writeback: full 128-lane stores instead of T masked 32-lane
    # partial stores interleaved with the chain.
    z_ref[...] = jnp.concatenate(hs, axis=1).astype(z_ref.dtype)   # (B, T*H)
    c_out_ref[...] = c.astype(c_out_ref.dtype)


def lstm_encoder(e, w_ih, w_hh, b_ih, b_hh):
    """e: (B, T, E) float32.  Returns (z, (h, c)) matching nn.LSTM(batch_first)."""
    B, T, E = e.shape
    H = w_hh.shape[1]
    assert w_ih.shape == (4 * H, E)
    assert w_hh.shape == (4 * H, H)

    wih_t = jnp.asarray(w_ih.T, jnp.float32)                      # (E, 4H)
    whh_t = jnp.asarray(w_hh.T, jnp.float32)                      # (H, 4H)
    bias = jnp.asarray(b_ih + b_hh, jnp.float32).reshape(1, 4 * H)

    e2d = e.astype(jnp.float32).reshape(B, T * E)                 # free reshape

    kernel = functools.partial(_lstm_kernel, batch=B, seq=T, n_embed=E, hidden=H)

    z2d, c_last = pl.pallas_call(
        kernel,
        out_shape=(
            jax.ShapeDtypeStruct((B, T * H), jnp.float32),        # z (lane-dense)
            jax.ShapeDtypeStruct((B, H), jnp.float32),            # c_T
        ),
        grid_spec=pltpu.PrefetchScalarGridSpec(
            num_scalar_prefetch=0,
            grid=(1,),                                            # single invocation
            in_specs=[
                pl.BlockSpec((B, T * E), lambda i: (0, 0)),       # e (full)
                pl.BlockSpec((E, 4 * H), lambda i: (0, 0)),       # W_ih^T (full)
                pl.BlockSpec((H, 4 * H), lambda i: (0, 0)),       # W_hh^T (full)
                pl.BlockSpec((1, 4 * H), lambda i: (0, 0)),       # bias
            ],
            out_specs=[
                pl.BlockSpec((B, T * H), lambda i: (0, 0)),       # z
                pl.BlockSpec((B, H), lambda i: (0, 0)),           # c_T
            ],
        ),
        compiler_params=pltpu.CompilerParams(
            dimension_semantics=("arbitrary",),
        ),
    )(e2d, wih_t, whh_t, bias)

    z = z2d.reshape(B, T, H)             # free row-major reshape, batch-first
    h_last = z[:, T - 1, :]              # byte-identical to h_T (saves one output DMA)
    return z, (h_last[None, :, :], c_last[None, :, :])


def _lstm_reference(e, w_ih, w_hh, b_ih, b_hh):
    """Pure-JAX f32 reference of nn.LSTM forward (for correctness check)."""
    B, T, E = e.shape
    H = w_hh.shape[1]
    h0 = jnp.zeros((B, H), jnp.float32)
    c0 = jnp.zeros((B, H), jnp.float32)
    bias = b_ih + b_hh
    hp = jax.lax.Precision.HIGHEST

    def step(carry, x_t):
        h, c = carry
        gates = (jnp.dot(x_t, w_ih.T, precision=hp)
                 + jnp.dot(h, w_hh.T, precision=hp) + bias)
        i = jax.nn.sigmoid(gates[:, 0 * H:1 * H])
        f = jax.nn.sigmoid(gates[:, 1 * H:2 * H])
        g = jnp.tanh(gates[:, 2 * H:3 * H])
        o = jax.nn.sigmoid(gates[:, 3 * H:4 * H])
        c = f * c + i * g
        h = o * jnp.tanh(c)
        return (h, c), h

    (hT, cT), z_tm = jax.lax.scan(step, (h0, c0), jnp.transpose(e, (1, 0, 2)))
    return jnp.transpose(z_tm, (1, 0, 2)), (hT[None], cT[None])


if __name__ == "__main__":
    # Small shapes consistent with the module: args.n_embed=32, args.n_hidden=32
    B, T, E, H = 2, 8, 32, 32

    key = jax.random.PRNGKey(0)
    k_e, k_wih, k_whh, k_bih, k_bhh = jax.random.split(key, 5)

    # PyTorch LSTM default init: U(-1/sqrt(H), 1/sqrt(H)).
    bound = 1.0 / np.sqrt(H)
    e = jax.random.normal(k_e, (B, T, E), jnp.float32)
    w_ih = jax.random.uniform(k_wih, (4 * H, E), jnp.float32, -bound, bound)
    w_hh = jax.random.uniform(k_whh, (4 * H, H), jnp.float32, -bound, bound)
    b_ih = jax.random.uniform(k_bih, (4 * H,), jnp.float32, -bound, bound)
    b_hh = jax.random.uniform(k_bhh, (4 * H,), jnp.float32, -bound, bound)

    z, (h, c) = lstm_encoder(e, w_ih, w_hh, b_ih, b_hh)
    jax.block_until_ready((z, h, c))

    z_ref, (h_ref, c_ref) = _lstm_reference(e, w_ih, w_hh, b_ih, b_hh)
    # Tolerance accounts for bf16 operands on the recurrent matmul (f32 accum),
    # per the perf review; observed error is well below this.
    np.testing.assert_allclose(np.asarray(z), np.asarray(z_ref), rtol=1e-2, atol=1e-2)
    np.testing.assert_allclose(np.asarray(h), np.asarray(h_ref), rtol=1e-2, atol=1e-2)
    np.testing.assert_allclose(np.asarray(c), np.asarray(c_ref), rtol=1e-2, atol=1e-2)

    assert z.shape == (B, T, H) and h.shape == (1, B, H) and c.shape == (1, B, H)
    print("KERNEL_OK")
</pallas_src>

<mosaic_0001>
module attributes {stable_mosaic.version = 11 : i64} {
  func.func @_lstm_kernel(%arg0: i32, %arg1: memref<2x256xf32, #tpu.memory_space<vmem>>, %arg2: memref<32x128xf32, #tpu.memory_space<vmem>>, %arg3: memref<32x128xf32, #tpu.memory_space<vmem>>, %arg4: memref<1x128xf32, #tpu.memory_space<vmem>>, %arg5: memref<2x256xf32, #tpu.memory_space<vmem>>, %arg6: memref<2x32xf32, #tpu.memory_space<vmem>>) attributes {dimension_semantics = [#tpu.dimension_semantics<arbitrary>], iteration_bounds = array<i64: 1>, scalar_prefetch = 0 : i64, scratch_operands = 0 : i64, tpu.core_type = #tpu.core_type<tc>, window_params = [{pipeline_mode = #tpu.pipeline_mode<synchronous>, transform_indices = @transform_0, window_bounds = array<i64: 2, 256>}, {pipeline_mode = #tpu.pipeline_mode<synchronous>, transform_indices = @transform_1, window_bounds = array<i64: 32, 128>}, {pipeline_mode = #tpu.pipeline_mode<synchronous>, transform_indices = @transform_2, window_bounds = array<i64: 32, 128>}, {pipeline_mode = #tpu.pipeline_mode<synchronous>, transform_indices = @transform_3, window_bounds = array<i64: 1, 128>}, {pipeline_mode = #tpu.pipeline_mode<synchronous>, transform_indices = @transform_4, window_bounds = array<i64: 2, 256>}, {pipeline_mode = #tpu.pipeline_mode<synchronous>, transform_indices = @transform_5, window_bounds = array<i64: 2, 32>}]} {
    %c0 = arith.constant 0 : index
    %c0_0 = arith.constant 0 : index
    %0 = vector.load %arg1[%c0, %c0_0] : memref<2x256xf32, #tpu.memory_space<vmem>>, vector<2x256xf32>
    %c0_1 = arith.constant 0 : index
    %c0_2 = arith.constant 0 : index
    %1 = vector.load %arg2[%c0_1, %c0_2] : memref<32x128xf32, #tpu.memory_space<vmem>>, vector<32x128xf32>
    %c0_3 = arith.constant 0 : index
    %c0_4 = arith.constant 0 : index
    %2 = vector.load %arg3[%c0_3, %c0_4] : memref<32x128xf32, #tpu.memory_space<vmem>>, vector<32x128xf32>
    %3 = arith.truncf %2 : vector<32x128xf32> to vector<32x128xbf16>
    %c0_5 = arith.constant 0 : index
    %c0_6 = arith.constant 0 : index
    %4 = vector.load %arg4[%c0_5, %c0_6] : memref<1x128xf32, #tpu.memory_space<vmem>>, vector<1x128xf32>
    %5 = vector.shape_cast %4 : vector<1x128xf32> to vector<1x128xf32>
    %6 = vector.broadcast %5 : vector<1x128xf32> to vector<2x128xf32>
    %7 = vector.extract_strided_slice %0 {offsets = [0, 0], sizes = [2, 32], strides = [1, 1]} : vector<2x256xf32> to vector<2x32xf32>
    %cst = arith.constant dense<0.000000e+00> : vector<2x128xf32>
    %8 = tpu.matmul %7, %1, %cst {dimension_numbers = #tpu.dot_dimension_numbers<[1], [0], [0], [1], [0, 0, 1, 1], [], []>} : vector<2x32xf32>, vector<32x128xf32>, vector<2x128xf32> -> vector<2x128xf32>
    %9 = arith.addf %8, %6 : vector<2x128xf32>
    %10 = vector.extract_strided_slice %0 {offsets = [0, 32], sizes = [2, 32], strides = [1, 1]} : vector<2x256xf32> to vector<2x32xf32>
    %cst_7 = arith.constant dense<0.000000e+00> : vector<2x128xf32>
    %11 = tpu.matmul %10, %1, %cst_7 {dimension_numbers = #tpu.dot_dimension_numbers<[1], [0], [0], [1], [0, 0, 1, 1], [], []>} : vector<2x32xf32>, vector<32x128xf32>, vector<2x128xf32> -> vector<2x128xf32>
    %12 = arith.addf %11, %6 : vector<2x128xf32>
    %13 = vector.extract_strided_slice %0 {offsets = [0, 64], sizes = [2, 32], strides = [1, 1]} : vector<2x256xf32> to vector<2x32xf32>
    %cst_8 = arith.constant dense<0.000000e+00> : vector<2x128xf32>
    %14 = tpu.matmul %13, %1, %cst_8 {dimension_numbers = #tpu.dot_dimension_numbers<[1], [0], [0], [1], [0, 0, 1, 1], [], []>} : vector<2x32xf32>, vector<32x128xf32>, vector<2x128xf32> -> vector<2x128xf32>
    %15 = arith.addf %14, %6 : vector<2x128xf32>
    %16 = vector.extract_strided_slice %0 {offsets = [0, 96], sizes = [2, 32], strides = [1, 1]} : vector<2x256xf32> to vector<2x32xf32>
    %cst_9 = arith.constant dense<0.000000e+00> : vector<2x128xf32>
    %17 = tpu.matmul %16, %1, %cst_9 {dimension_numbers = #tpu.dot_dimension_numbers<[1], [0], [0], [1], [0, 0, 1, 1], [], []>} : vector<2x32xf32>, vector<32x128xf32>, vector<2x128xf32> -> vector<2x128xf32>
    %18 = arith.addf %17, %6 : vector<2x128xf32>
    %19 = vector.extract_strided_slice %0 {offsets = [0, 128], sizes = [2, 32], strides = [1, 1]} : vector<2x256xf32> to vector<2x32xf32>
    %cst_10 = arith.constant dense<0.000000e+00> : vector<2x128xf32>
    %20 = tpu.matmul %19, %1, %cst_10 {dimension_numbers = #tpu.dot_dimension_numbers<[1], [0], [0], [1], [0, 0, 1, 1], [], []>} : vector<2x32xf32>, vector<32x128xf32>, vector<2x128xf32> -> vector<2x128xf32>
    %21 = arith.addf %20, %6 : vector<2x128xf32>
    %22 = vector.extract_strided_slice %0 {offsets = [0, 160], sizes = [2, 32], strides = [1, 1]} : vector<2x256xf32> to vector<2x32xf32>
    %cst_11 = arith.constant dense<0.000000e+00> : vector<2x128xf32>
    %23 = tpu.matmul %22, %1, %cst_11 {dimension_numbers = #tpu.dot_dimension_numbers<[1], [0], [0], [1], [0, 0, 1, 1], [], []>} : vector<2x32xf32>, vector<32x128xf32>, vector<2x128xf32> -> vector<2x128xf32>
    %24 = arith.addf %23, %6 : vector<2x128xf32>
    %25 = vector.extract_strided_slice %0 {offsets = [0, 192], sizes = [2, 32], strides = [1, 1]} : vector<2x256xf32> to vector<2x32xf32>
    %cst_12 = arith.constant dense<0.000000e+00> : vector<2x128xf32>
    %26 = tpu.matmul %25, %1, %cst_12 {dimension_numbers = #tpu.dot_dimension_numbers<[1], [0], [0], [1], [0, 0, 1, 1], [], []>} : vector<2x32xf32>, vector<32x128xf32>, vector<2x128xf32> -> vector<2x128xf32>
    %27 = arith.addf %26, %6 : vector<2x128xf32>
    %28 = vector.extract_strided_slice %0 {offsets = [0, 224], sizes = [2, 32], strides = [1, 1]} : vector<2x256xf32> to vector<2x32xf32>
    %cst_13 = arith.constant dense<0.000000e+00> : vector<2x128xf32>
    %29 = tpu.matmul %28, %1, %cst_13 {dimension_numbers = #tpu.dot_dimension_numbers<[1], [0], [0], [1], [0, 0, 1, 1], [], []>} : vector<2x32xf32>, vector<32x128xf32>, vector<2x128xf32> -> vector<2x128xf32>
    %30 = arith.addf %29, %6 : vector<2x128xf32>
    %cst_14 = arith.constant 0.000000e+00 : f32
    %31 = vector.broadcast %cst_14 : f32 to vector<2x32xf32>
    %cst_15 = arith.constant 0.000000e+00 : f32
    %32 = vector.broadcast %cst_15 : f32 to vector<2x32xf32>
    %33 = arith.truncf %31 : vector<2x32xf32> to vector<2x32xbf16>
    %cst_16 = arith.constant dense<0.000000e+00> : vector<2x128xf32>
    %34 = tpu.matmul %33, %3, %cst_16 {dimension_numbers = #tpu.dot_dimension_numbers<[1], [0], [0], [1], [0, 0, 1, 1], [], []>} : vector<2x32xbf16>, vector<32x128xbf16>, vector<2x128xf32> -> vector<2x128xf32>
    %35 = arith.addf %9, %34 : vector<2x128xf32>
    %36 = arith.negf %35 : vector<2x128xf32>
    %37 = math.exp %36 : vector<2x128xf32>
    %cst_17 = arith.constant 1.000000e+00 : f32
    %38 = vector.broadcast %cst_17 : f32 to vector<2x128xf32>
    %39 = arith.addf %38, %37 : vector<2x128xf32>
    %40 = arith.divf %38, %39 : vector<2x128xf32>
    %41 = vector.extract_strided_slice %40 {offsets = [0, 0], sizes = [2, 32], strides = [1, 1]} : vector<2x128xf32> to vector<2x32xf32>
    %42 = vector.extract_strided_slice %40 {offsets = [0, 32], sizes = [2, 32], strides = [1, 1]} : vector<2x128xf32> to vector<2x32xf32>
    %43 = vector.extract_strided_slice %40 {offsets = [0, 96], sizes = [2, 32], strides = [1, 1]} : vector<2x128xf32> to vector<2x32xf32>
    %44 = vector.extract_strided_slice %35 {offsets = [0, 64], sizes = [2, 32], strides = [1, 1]} : vector<2x128xf32> to vector<2x32xf32>
    %45 = math.tanh %44 : vector<2x32xf32>
    %46 = arith.mulf %42, %32 : vector<2x32xf32>
    %47 = arith.mulf %41, %45 : vector<2x32xf32>
    %48 = arith.addf %46, %47 : vector<2x32xf32>
    %49 = math.tanh %48 : vector<2x32xf32>
    %50 = arith.mulf %43, %49 : vector<2x32xf32>
    %51 = arith.truncf %50 : vector<2x32xf32> to vector<2x32xbf16>
    %cst_18 = arith.constant dense<0.000000e+00> : vector<2x128xf32>
    %52 = tpu.matmul %51, %3, %cst_18 {dimension_numbers = #tpu.dot_dimension_numbers<[1], [0], [0], [1], [0, 0, 1, 1], [], []>} : vector<2x32xbf16>, vector<32x128xbf16>, vector<2x128xf32> -> vector<2x128xf32>
    %53 = arith.addf %12, %52 : vector<2x128xf32>
    %54 = arith.negf %53 : vector<2x128xf32>
    %55 = math.exp %54 : vector<2x128xf32>
    %cst_19 = arith.constant 1.000000e+00 : f32
    %56 = vector.broadcast %cst_19 : f32 to vector<2x128xf32>
    %57 = arith.addf %56, %55 : vector<2x128xf32>
    %58 = arith.divf %56, %57 : vector<2x128xf32>
    %59 = vector.extract_strided_slice %58 {offsets = [0, 0], sizes = [2, 32], strides = [1, 1]} : vector<2x128xf32> to vector<2x32xf32>
    %60 = vector.extract_strided_slice %58 {offsets = [0, 32], sizes = [2, 32], strides = [1, 1]} : vector<2x128xf32> to vector<2x32xf32>
    %61 = vector.extract_strided_slice %58 {offsets = [0, 96], sizes = [2, 32], strides = [1, 1]} : vector<2x128xf32> to vector<2x32xf32>
    %62 = vector.extract_strided_slice %53 {offsets = [0, 64], sizes = [2, 32], strides = [1, 1]} : vector<2x128xf32> to vector<2x32xf32>
    %63 = math.tanh %62 : vector<2x32xf32>
    %64 = arith.mulf %60, %48 : vector<2x32xf32>
    %65 = arith.mulf %59, %63 : vector<2x32xf32>
    %66 = arith.addf %64, %65 : vector<2x32xf32>
    %67 = math.tanh %66 : vector<2x32xf32>
    %68 = arith.mulf %61, %67 : vector<2x32xf32>
    %69 = arith.truncf %68 : vector<2x32xf32> to vector<2x32xbf16>
    %cst_20 = arith.constant dense<0.000000e+00> : vector<2x128xf32>
    %70 = tpu.matmul %69, %3, %cst_20 {dimension_numbers = #tpu.dot_dimension_numbers<[1], [0], [0], [1], [0, 0, 1, 1], [], []>} : vector<2x32xbf16>, vector<32x128xbf16>, vector<2x128xf32> -> vector<2x128xf32>
    %71 = arith.addf %15, %70 : vector<2x128xf32>
    %72 = arith.negf %71 : vector<2x128xf32>
    %73 = math.exp %72 : vector<2x128xf32>
    %cst_21 = arith.constant 1.000000e+00 : f32
    %74 = vector.broadcast %cst_21 : f32 to vector<2x128xf32>
    %75 = arith.addf %74, %73 : vector<2x128xf32>
    %76 = arith.divf %74, %75 : vector<2x128xf32>
    %77 = vector.extract_strided_slice %76 {offsets = [0, 0], sizes = [2, 32], strides = [1, 1]} : vector<2x128xf32> to vector<2x32xf32>
    %78 = vector.extract_strided_slice %76 {offsets = [0, 32], sizes = [2, 32], strides = [1, 1]} : vector<2x128xf32> to vector<2x32xf32>
    %79 = vector.extract_strided_slice %76 {offsets = [0, 96], sizes = [2, 32], strides = [1, 1]} : vector<2x128xf32> to vector<2x32xf32>
    %80 = vector.extract_strided_slice %71 {offsets = [0, 64], sizes = [2, 32], strides = [1, 1]} : vector<2x128xf32> to vector<2x32xf32>
    %81 = math.tanh %80 : vector<2x32xf32>
    %82 = arith.mulf %78, %66 : vector<2x32xf32>
    %83 = arith.mulf %77, %81 : vector<2x32xf32>
    %84 = arith.addf %82, %83 : vector<2x32xf32>
    %85 = math.tanh %84 : vector<2x32xf32>
    %86 = arith.mulf %79, %85 : vector<2x32xf32>
    %87 = arith.truncf %86 : vector<2x32xf32> to vector<2x32xbf16>
    %cst_22 = arith.constant dense<0.000000e+00> : vector<2x128xf32>
    %88 = tpu.matmul %87, %3, %cst_22 {dimension_numbers = #tpu.dot_dimension_numbers<[1], [0], [0], [1], [0, 0, 1, 1], [], []>} : vector<2x32xbf16>, vector<32x128xbf16>, vector<2x128xf32> -> vector<2x128xf32>
    %89 = arith.addf %18, %88 : vector<2x128xf32>
    %90 = arith.negf %89 : vector<2x128xf32>
    %91 = math.exp %90 : vector<2x128xf32>
    %cst_23 = arith.constant 1.000000e+00 : f32
    %92 = vector.broadcast %cst_23 : f32 to vector<2x128xf32>
    %93 = arith.addf %92, %91 : vector<2x128xf32>
    %94 = arith.divf %92, %93 : vector<2x128xf32>
    %95 = vector.extract_strided_slice %94 {offsets = [0, 0], sizes = [2, 32], strides = [1, 1]} : vector<2x128xf32> to vector<2x32xf32>
    %96 = vector.extract_strided_slice %94 {offsets = [0, 32], sizes = [2, 32], strides = [1, 1]} : vector<2x128xf32> to vector<2x32xf32>
    %97 = vector.extract_strided_slice %94 {offsets = [0, 96], sizes = [2, 32], strides = [1, 1]} : vector<2x128xf32> to vector<2x32xf32>
    %98 = vector.extract_strided_slice %89 {offsets = [0, 64], sizes = [2, 32], strides = [1, 1]} : vector<2x128xf32> to vector<2x32xf32>
    %99 = math.tanh %98 : vector<2x32xf32>
    %100 = arith.mulf %96, %84 : vector<2x32xf32>
    %101 = arith.mulf %95, %99 : vector<2x32xf32>
    %102 = arith.addf %100, %101 : vector<2x32xf32>
    %103 = math.tanh %102 : vector<2x32xf32>
    %104 = arith.mulf %97, %103 : vector<2x32xf32>
    %105 = arith.truncf %104 : vector<2x32xf32> to vector<2x32xbf16>
    %cst_24 = arith.constant dense<0.000000e+00> : vector<2x128xf32>
    %106 = tpu.matmul %105, %3, %cst_24 {dimension_numbers = #tpu.dot_dimension_numbers<[1], [0], [0], [1], [0, 0, 1, 1], [], []>} : vector<2x32xbf16>, vector<32x128xbf16>, vector<2x128xf32> -> vector<2x128xf32>
    %107 = arith.addf %21, %106 : vector<2x128xf32>
    %108 = arith.negf %107 : vector<2x128xf32>
    %109 = math.exp %108 : vector<2x128xf32>
    %cst_25 = arith.constant 1.000000e+00 : f32
    %110 = vector.broadcast %cst_25 : f32 to vector<2x128xf32>
    %111 = arith.addf %110, %109 : vector<2x128xf32>
    %112 = arith.divf %110, %111 : vector<2x128xf32>
    %113 = vector.extract_strided_slice %112 {offsets = [0, 0], sizes = [2, 32], strides = [1, 1]} : vector<2x128xf32> to vector<2x32xf32>
    %114 = vector.extract_strided_slice %112 {offsets = [0, 32], sizes = [2, 32], strides = [1, 1]} : vector<2x128xf32> to vector<2x32xf32>
    %115 = vector.extract_strided_slice %112 {offsets = [0, 96], sizes = [2, 32], strides = [1, 1]} : vector<2x128xf32> to vector<2x32xf32>
    %116 = vector.extract_strided_slice %107 {offsets = [0, 64], sizes = [2, 32], strides = [1, 1]} : vector<2x128xf32> to vector<2x32xf32>
    %117 = math.tanh %116 : vector<2x32xf32>
    %118 = arith.mulf %114, %102 : vector<2x32xf32>
    %119 = arith.mulf %113, %117 : vector<2x32xf32>
    %120 = arith.addf %118, %119 : vector<2x32xf32>
    %121 = math.tanh %120 : vector<2x32xf32>
    %122 = arith.mulf %115, %121 : vector<2x32xf32>
    %123 = arith.truncf %122 : vector<2x32xf32> to vector<2x32xbf16>
    %cst_26 = arith.constant dense<0.000000e+00> : vector<2x128xf32>
    %124 = tpu.matmul %123, %3, %cst_26 {dimension_numbers = #tpu.dot_dimension_numbers<[1], [0], [0], [1], [0, 0, 1, 1], [], []>} : vector<2x32xbf16>, vector<32x128xbf16>, vector<2x128xf32> -> vector<2x128xf32>
    %125 = arith.addf %24, %124 : vector<2x128xf32>
    %126 = arith.negf %125 : vector<2x128xf32>
    %127 = math.exp %126 : vector<2x128xf32>
    %cst_27 = arith.constant 1.000000e+00 : f32
    %128 = vector.broadcast %cst_27 : f32 to vector<2x128xf32>
    %129 = arith.addf %128, %127 : vector<2x128xf32>
    %130 = arith.divf %128, %129 : vector<2x128xf32>
    %131 = vector.extract_strided_slice %130 {offsets = [0, 0], sizes = [2, 32], strides = [1, 1]} : vector<2x128xf32> to vector<2x32xf32>
    %132 = vector.extract_strided_slice %130 {offsets = [0, 32], sizes = [2, 32], strides = [1, 1]} : vector<2x128xf32> to vector<2x32xf32>
    %133 = vector.extract_strided_slice %130 {offsets = [0, 96], sizes = [2, 32], strides = [1, 1]} : vector<2x128xf32> to vector<2x32xf32>
    %134 = vector.extract_strided_slice %125 {offsets = [0, 64], sizes = [2, 32], strides = [1, 1]} : vector<2x128xf32> to vector<2x32xf32>
    %135 = math.tanh %134 : vector<2x32xf32>
    %136 = arith.mulf %132, %120 : vector<2x32xf32>
    %137 = arith.mulf %131, %135 : vector<2x32xf32>
    %138 = arith.addf %136, %137 : vector<2x32xf32>
    %139 = math.tanh %138 : vector<2x32xf32>
    %140 = arith.mulf %133, %139 : vector<2x32xf32>
    %141 = arith.truncf %140 : vector<2x32xf32> to vector<2x32xbf16>
    %cst_28 = arith.constant dense<0.000000e+00> : vector<2x128xf32>
    %142 = tpu.matmul %141, %3, %cst_28 {dimension_numbers = #tpu.dot_dimension_numbers<[1], [0], [0], [1], [0, 0, 1, 1], [], []>} : vector<2x32xbf16>, vector<32x128xbf16>, vector<2x128xf32> -> vector<2x128xf32>
    %143 = arith.addf %27, %142 : vector<2x128xf32>
    %144 = arith.negf %143 : vector<2x128xf32>
    %145 = math.exp %144 : vector<2x128xf32>
    %cst_29 = arith.constant 1.000000e+00 : f32
    %146 = vector.broadcast %cst_29 : f32 to vector<2x128xf32>
    %147 = arith.addf %146, %145 : vector<2x128xf32>
    %148 = arith.divf %146, %147 : vector<2x128xf32>
    %149 = vector.extract_strided_slice %148 {offsets = [0, 0], sizes = [2, 32], strides = [1, 1]} : vector<2x128xf32> to vector<2x32xf32>
    %150 = vector.extract_strided_slice %148 {offsets = [0, 32], sizes = [2, 32], strides = [1, 1]} : vector<2x128xf32> to vector<2x32xf32>
    %151 = vector.extract_strided_slice %148 {offsets = [0, 96], sizes = [2, 32], strides = [1, 1]} : vector<2x128xf32> to vector<2x32xf32>
    %152 = vector.extract_strided_slice %143 {offsets = [0, 64], sizes = [2, 32], strides = [1, 1]} : vector<2x128xf32> to vector<2x32xf32>
    %153 = math.tanh %152 : vector<2x32xf32>
    %154 = arith.mulf %150, %138 : vector<2x32xf32>
    %155 = arith.mulf %149, %153 : vector<2x32xf32>
    %156 = arith.addf %154, %155 : vector<2x32xf32>
    %157 = math.tanh %156 : vector<2x32xf32>
    %158 = arith.mulf %151, %157 : vector<2x32xf32>
    %159 = arith.truncf %158 : vector<2x32xf32> to vector<2x32xbf16>
    %cst_30 = arith.constant dense<0.000000e+00> : vector<2x128xf32>
    %160 = tpu.matmul %159, %3, %cst_30 {dimension_numbers = #tpu.dot_dimension_numbers<[1], [0], [0], [1], [0, 0, 1, 1], [], []>} : vector<2x32xbf16>, vector<32x128xbf16>, vector<2x128xf32> -> vector<2x128xf32>
    %161 = arith.addf %30, %160 : vector<2x128xf32>
    %162 = arith.negf %161 : vector<2x128xf32>
    %163 = math.exp %162 : vector<2x128xf32>
    %cst_31 = arith.constant 1.000000e+00 : f32
    %164 = vector.broadcast %cst_31 : f32 to vector<2x128xf32>
    %165 = arith.addf %164, %163 : vector<2x128xf32>
    %166 = arith.divf %164, %165 : vector<2x128xf32>
    %167 = vector.extract_strided_slice %166 {offsets = [0, 0], sizes = [2, 32], strides = [1, 1]} : vector<2x128xf32> to vector<2x32xf32>
    %168 = vector.extract_strided_slice %166 {offsets = [0, 32], sizes = [2, 32], strides = [1, 1]} : vector<2x128xf32> to vector<2x32xf32>
    %169 = vector.extract_strided_slice %166 {offsets = [0, 96], sizes = [2, 32], strides = [1, 1]} : vector<2x128xf32> to vector<2x32xf32>
    %170 = vector.extract_strided_slice %161 {offsets = [0, 64], sizes = [2, 32], strides = [1, 1]} : vector<2x128xf32> to vector<2x32xf32>
    %171 = math.tanh %170 : vector<2x32xf32>
    %172 = arith.mulf %168, %156 : vector<2x32xf32>
    %173 = arith.mulf %167, %171 : vector<2x32xf32>
    %174 = arith.addf %172, %173 : vector<2x32xf32>
    %175 = math.tanh %174 : vector<2x32xf32>
    %176 = arith.mulf %169, %175 : vector<2x32xf32>
    %177 = tpu.concatenate %50, %68, %86, %104, %122, %140, %158, %176 in 1 : vector<2x32xf32>, vector<2x32xf32>, vector<2x32xf32>, vector<2x32xf32>, vector<2x32xf32>, vector<2x32xf32>, vector<2x32xf32>, vector<2x32xf32> -> vector<2x256xf32>
    %c0_32 = arith.constant 0 : index
    %c0_33 = arith.constant 0 : index
    %178 = vector.load %arg5[%c0_32, %c0_33] : memref<2x256xf32, #tpu.memory_space<vmem>>, vector<2x256xf32>
    tpu.vector_store %arg5[%c0_32, %c0_33], %177 {strides = array<i32>} : memref<2x256xf32, #tpu.memory_space<vmem>>, vector<2x256xf32>,
    %c0_34 = arith.constant 0 : index
    %c0_35 = arith.constant 0 : index
    %179 = vector.load %arg6[%c0_34, %c0_35] : memref<2x32xf32, #tpu.memory_space<vmem>>, vector<2x32xf32>
    tpu.vector_store %arg6[%c0_34, %c0_35], %174 {strides = array<i32>} : memref<2x32xf32, #tpu.memory_space<vmem>>, vector<2x32xf32>,
    return
  }
  func.func @transform_0(%arg0: i32) -> (i32, i32) {
    %c0_i32 = arith.constant 0 : i32
    %c0_i32_0 = arith.constant 0 : i32
    %c0_i32_1 = arith.constant 0 : i32
    return %c0_i32, %c0_i32_0 : i32, i32
  }
  func.func @transform_1(%arg0: i32) -> (i32, i32) {
    %c0_i32 = arith.constant 0 : i32
    %c0_i32_0 = arith.constant 0 : i32
    %c0_i32_1 = arith.constant 0 : i32
    return %c0_i32, %c0_i32_0 : i32, i32
  }
  func.func @transform_2(%arg0: i32) -> (i32, i32) {
    %c0_i32 = arith.constant 0 : i32
    %c0_i32_0 = arith.constant 0 : i32
    %c0_i32_1 = arith.constant 0 : i32
    return %c0_i32, %c0_i32_0 : i32, i32
  }
  func.func @transform_3(%arg0: i32) -> (i32, i32) {
    %c0_i32 = arith.constant 0 : i32
    %c0_i32_0 = arith.constant 0 : i32
    %c0_i32_1 = arith.constant 0 : i32
    return %c0_i32, %c0_i32_0 : i32, i32
  }
  func.func @transform_4(%arg0: i32) -> (i32, i32) {
    %c0_i32 = arith.constant 0 : i32
    %c0_i32_0 = arith.constant 0 : i32
    %c0_i32_1 = arith.constant 0 : i32
    return %c0_i32, %c0_i32_0 : i32, i32
  }
  func.func @transform_5(%arg0: i32) -> (i32, i32) {
    %c0_i32 = arith.constant 0 : i32
    %c0_i32_0 = arith.constant 0 : i32
    %c0_i32_1 = arith.constant 0 : i32
    return %c0_i32, %c0_i32_0 : i32, i32
  }
}

</mosaic_0001>

<llo_original>
// kernel: tpu_custom_call.1
$region0: #{tpu_custom_call.1}
  #allocation0 [shape = 'u32[]', space=smem, size = 0x4, offset = 0x4, fixed_abs, tag = 'smem constant byte address 0x4 - core index']
  #allocation1 [shape = 'u32[144,128]{1,0:T(1,128)}', space=vmem, size = 0x12000, scoped, tag = 'internal scratch']
  %s0 = inlined_call_operand.hbm [shape: f32[2,256], index: 0, kind: input, shape index: {}]
  %s1 = inlined_call_operand.hbm [shape: f32[32,128], index: 1, kind: input, shape index: {}]
  %s2 = inlined_call_operand.hbm [shape: f32[32,128], index: 2, kind: input, shape index: {}]
  %s3 = inlined_call_operand.vmem [shape: f32[1,128], index: 3, kind: input, shape index: {}]
  %s4 = inlined_call_operand.hbm [shape: f32[2,256], index: 4, kind: output, shape index: {0}]
  %s5 = inlined_call_operand.hbm [shape: f32[2,32], index: 5, kind: output, shape index: {1}]
  %6 = xla_tuple %s4, %s5
  %s7 = sld [smem:[#allocation0]]
  $region46: #{tpu_custom_call.1} parent=0
    _
  %s9 = ssub.s32 1, %s7
  %s10 = scalar_select 0, %s9, %s7
  $region1: #{tpu_custom_call.1} parent=0
    #allocation2 [shape = 'u8[2048]{0}', space=vmem, size = 0x800, scoped, tag = 'input window, operand 0, single buffered']
    #allocation3 [shape = 's32[1]{0}', space=sflag, size = 0x4, scoped, tag = 'scoped memory for tpu_custom_call.1']
    #allocation4 [shape = 's32[1]{0}', space=sflag, size = 0x4, scoped, tag = 'scoped memory for tpu_custom_call.1']
    #allocation5 [shape = 'u8[16384]{0}', space=vmem, size = 0x4000, scoped, tag = 'input window, operand 1, single buffered']
    #allocation6 [shape = 's32[1]{0}', space=sflag, size = 0x4, scoped, tag = 'scoped memory for tpu_custom_call.1']
    #allocation7 [shape = 'u8[16384]{0}', space=vmem, size = 0x4000, scoped, tag = 'input window, operand 2, single buffered']
    #allocation8 [shape = 'u8[2048]{0}', space=vmem, size = 0x800, scoped, tag = 'output window, operand 0, single buffered']
    #allocation9 [shape = 'u8[1024]{0}', space=vmem, size = 0x400, scoped, tag = 'output window, operand 1, single buffered']
    #allocation10 [shape = 's32[1]{0}', space=sflag, size = 0x4, scoped, tag = 'scoped memory for tpu_custom_call.1']
    %11 = vsyncpa [#allocation3], 0
    %12 = vsyncpa [#allocation6], 0
    %13 = vsyncpa [#allocation4], 0
    %14 = vsyncpa [#allocation10], 0
    // Predicated region
    $region2: #{tpu_custom_call.1} parent=1 // pred_check
      _
    $region3: #{tpu_custom_call.1} parent=1 // pred_check_branch
      %16 = sbr.rel (0) target = $region5
    $region4: #{tpu_custom_call.1} parent=1 // pred_region
      %s18 = ssub.s32 64, 64
      %19 = vsyncadd [#allocation3], %s18
      %s21 = sshll.u32 [#allocation2], 4
      %s22 = int_to_ptr.vmem [resolvable:$true] %s21
      %24 = dma.hbm_to_vmem [thread:$0]  %s0, 64, %s22, [#allocation3]
    $region5: #{tpu_custom_call.1} parent=1 // pred_fallthru
      _
    // Predicated region
    $region6: #{tpu_custom_call.1} parent=1 // pred_check
      _
    $region7: #{tpu_custom_call.1} parent=1 // pred_check_branch
      %26 = sbr.rel (0) target = $region9
    $region8: #{tpu_custom_call.1} parent=1 // pred_region
      %s28 = ssub.s32 512, 512
      %29 = vsyncadd [#allocation6], %s28
      %s30 = sshll.u32 [#allocation5], 4
      %s31 = int_to_ptr.vmem [resolvable:$true] %s30
      %36 = dma.hbm_to_vmem [thread:$0]  %s1, 512, %s31, [#allocation6], 128, 128, 8
    $region9: #{tpu_custom_call.1} parent=1 // pred_fallthru
      _
    // Predicated region
    $region10: #{tpu_custom_call.1} parent=1 // pred_check
      _
    $region11: #{tpu_custom_call.1} parent=1 // pred_check_branch
      %38 = sbr.rel (0) target = $region13
    $region12: #{tpu_custom_call.1} parent=1 // pred_region
      %s40 = ssub.s32 512, 512
      %41 = vsyncadd [#allocation6], %s40
      %s42 = sshll.u32 [#allocation7], 4
      %s43 = int_to_ptr.vmem [resolvable:$true] %s42
      %48 = dma.hbm_to_vmem [thread:$0]  %s2, 512, %s43, [#allocation6], 128, 128, 8
    $region13: #{tpu_custom_call.1} parent=1 // pred_fallthru
      _
    // Predicated region
    $region14: #{tpu_custom_call.1} parent=1 // pred_check
      _
    $region15: #{tpu_custom_call.1} parent=1 // pred_check_branch
      %50 = sbr.rel (0) target = $region17
    $region16: #{tpu_custom_call.1} parent=1 // pred_region
      _
    $region17: #{tpu_custom_call.1} parent=1 // pred_fallthru
      _
    // Predicated region
    $region18: #{tpu_custom_call.1} parent=1 // pred_check
      _
    $region19: #{tpu_custom_call.1} parent=1 // pred_check_branch
      %52 = sbr.rel (0) target = $region21
    $region20: #{tpu_custom_call.1} parent=1 // pred_region
      %53 = dma.done [#allocation3], 64
    $region21: #{tpu_custom_call.1} parent=1 // pred_fallthru
      _
    // Predicated region
    $region22: #{tpu_custom_call.1} parent=1 // pred_check
      _
    $region23: #{tpu_custom_call.1} parent=1 // pred_check_branch
      %55 = sbr.rel (0) target = $region25
    $region24: #{tpu_custom_call.1} parent=1 // pred_region
      %56 = dma.done [#allocation6], 512
    $region25: #{tpu_custom_call.1} parent=1 // pred_fallthru
      _
    // Predicated region
    $region26: #{tpu_custom_call.1} parent=1 // pred_check
      _
    $region27: #{tpu_custom_call.1} parent=1 // pred_check_branch
      %58 = sbr.rel (0) target = $region29
    $region28: #{tpu_custom_call.1} parent=1 // pred_region
      %59 = dma.done [#allocation6], 512
    $region29: #{tpu_custom_call.1} parent=1 // pred_fallthru
      _
    %v61 = vld [vmem:[#allocation2] sm:$0xf]
    %v62 = vld [vmem:[#allocation5] sm:$0xff]
    %v63 = vld [vmem:[#allocation5 + $0x8] sm:$0xff]
    %v64 = vld [vmem:[#allocation5 + $0x10] sm:$0xff]
    %v65 = vld [vmem:[#allocation5 + $0x18] sm:$0xff]
    %v66 = vld [vmem:[#allocation7] sm:$0xff]
    %v67 = vld [vmem:[#allocation7 + $0x8] sm:$0xff]
    %v68 = vld [vmem:[#allocation7 + $0x10] sm:$0xff]
    %v69 = vld [vmem:[#allocation7 + $0x18] sm:$0xff]
    %v70 = vpack.c.bf16 %v67, %v66
    %v71 = vpack.c.bf16 %v69, %v68
    %v72 = vld [vmem:[%s3] sm:$0x1]
    %v74 = vlaneseq
    %v75 = vshrl.u32 %v74, 7
    %v76 = vsub.s32 0, %v75
    %v77 = vrot.slane %v72, %v76
    %vm79 = vcmask 261120
    %v81 = vsel %vm79, %v61, 0
    %83 = vmatprep.subr.mxu0 0.0
    %84 = vmatpush1.msra.mxu0 %v62
    %85 = vmatprep.subr.mxu0 0.0
    %86 = vmatpush1.msra.mxu0 %v63
    %87 = vmatprep.subr.mxu0 0.0
    %88 = vmatpush1.msra.mxu0 %v64
    %89 = vmatprep.subr.mxu0 0.0
    %90 = vmatpush1.msra.mxu0 %v65
    %91 = vmatprep.subr.mxu0 0.0
    %92 = vmatpush1.msra.mxu0 0.0
    %93 = vmatprep.subr.mxu0 0.0
    %94 = vmatpush1.msra.mxu0 0.0
    %95 = vmatprep.subr.mxu0 0.0
    %96 = vmatpush1.msra.mxu0 0.0
    %97 = vmatprep.subr.mxu0 0.0
    %98 = vmatpush1.msra.mxu0 0.0
    %99 = vmatprep.subr.mxu0 0.0
    %100 = vmatpush1.msra.mxu0 0.0
    %101 = vmatprep.subr.mxu0 0.0
    %102 = vmatpush1.msra.mxu0 0.0
    %103 = vmatprep.subr.mxu0 0.0
    %104 = vmatpush1.msra.mxu0 0.0
    %105 = vmatprep.subr.mxu0 0.0
    %106 = vmatpush1.msra.mxu0 0.0
    %107 = vmatprep.subr.mxu0 0.0
    %108 = vmatpush1.msra.mxu0 0.0
    %109 = vmatprep.subr.mxu0 0.0
    %110 = vmatpush1.msra.mxu0 0.0
    %111 = vmatprep.subr.mxu0 0.0
    %112 = vmatpush1.msra.mxu0 0.0
    %113 = vmatprep.subr.mxu0 0.0
    %114 = vmatpush1.msra.mxu0 0.0
    %115 = vmatprep.subr.mxu0 0.0
    %116 = vmatpush1.msra.mxu0 0.0
    %117 = vmatprep.subr.mxu0 0.0
    %118 = vmatpush1.msra.mxu0 0.0
    %119 = vmatprep.subr.mxu0 0.0
    %120 = vmatpush1.msra.mxu0 0.0
    %121 = vmatprep.subr.mxu0 0.0
    %122 = vmatpush1.msra.mxu0 0.0
    %123 = vmatprep.subr.mxu0 0.0
    %124 = vmatpush1.msra.mxu0 0.0
    %125 = vmatprep.subr.mxu0 0.0
    %126 = vmatpush1.msra.mxu0 0.0
    %127 = vmatprep.subr.mxu0 0.0
    %128 = vmatpush1.msra.mxu0 0.0
    %129 = vmatprep.subr.mxu0 0.0
    %130 = vmatpush1.msra.mxu0 0.0
    %131 = vmatprep.subr.mxu0 0.0
    %132 = vmatpush1.msra.mxu0 0.0
    %133 = vmatprep.subr.mxu0 0.0
    %134 = vmatpush1.msra.mxu0 0.0
    %135 = vmatprep.subr.mxu0 0.0
    %136 = vmatpush1.msra.mxu0 0.0
    %137 = vmatprep.subr.mxu0 0.0
    %138 = vmatpush1.msra.mxu0 0.0
    %139 = vmatprep.subr.mxu0 0.0
    %140 = vmatpush1.msra.mxu0 0.0
    %141 = vmatprep.subr.mxu0 0.0
    %142 = vmatpush1.msra.mxu0 0.0
    %143 = vmatprep.subr.mxu0 0.0
    %144 = vmatpush1.msra.mxu0 0.0
    %145 = vmatprep.subr.mxu0 0.0
    %146 = vmatpush1.msra.mxu0 0.0
    %147 = vmatprep.mubr.f32.mxu0 0.0
    %148 = vmatmul.mubr.f32.gmra.mrb[0].mxu0 %v81
    %v149 = vpop.f32.mrb[0].mxu0
    %v150 = vadd.f32 %v77, %v149
    %v151 = vpop.f32.mrb[0].mxu0
    %152 = vdwg.mxu0
    %v154 = vunpack.c.l.s4 1983009808
    %v155 = vunpack.c.0.s8 %v154
    %v156 = vlaneseq
    %v157 = vshrl.u32 %v156, 7
    %v158 = vsub.s32 %v155, %v157
    %v159 = vrot.slane %v61, %v158
    %160 = vrot.lane.b32.xlu0 %v159, 96
    %v161 = vpop.permute.xlu0 %160
    %v162 = vsel %vm79, %v161, 0
    %164 = vmatprep.subr.mxu0 0.0
    %165 = vmatpush1.msra.mxu0 %v62
    %166 = vmatprep.subr.mxu0 0.0
    %167 = vmatpush1.msra.mxu0 %v63
    %168 = vmatprep.subr.mxu0 0.0
    %169 = vmatpush1.msra.mxu0 %v64
    %170 = vmatprep.subr.mxu0 0.0
    %171 = vmatpush1.msra.mxu0 %v65
    %172 = vmatprep.subr.mxu0 0.0
    %173 = vmatpush1.msra.mxu0 0.0
    %174 = vmatprep.subr.mxu0 0.0
    %175 = vmatpush1.msra.mxu0 0.0
    %176 = vmatprep.subr.mxu0 0.0
    %177 = vmatpush1.msra.mxu0 0.0
    %178 = vmatprep.subr.mxu0 0.0
    %179 = vmatpush1.msra.mxu0 0.0
    %180 = vmatprep.subr.mxu0 0.0
    %181 = vmatpush1.msra.mxu0 0.0
    %182 = vmatprep.subr.mxu0 0.0
    %183 = vmatpush1.msra.mxu0 0.0
    %184 = vmatprep.subr.mxu0 0.0
    %185 = vmatpush1.msra.mxu0 0.0
    %186 = vmatprep.subr.mxu0 0.0
    %187 = vmatpush1.msra.mxu0 0.0
    %188 = vmatprep.subr.mxu0 0.0
    %189 = vmatpush1.msra.mxu0 0.0
    %190 = vmatprep.subr.mxu0 0.0
    %191 = vmatpush1.msra.mxu0 0.0
    %192 = vmatprep.subr.mxu0 0.0
    %193 = vmatpush1.msra.mxu0 0.0
    %194 = vmatprep.subr.mxu0 0.0
    %195 = vmatpush1.msra.mxu0 0.0
    %196 = vmatprep.subr.mxu0 0.0
    %197 = vmatpush1.msra.mxu0 0.0
    %198 = vmatprep.subr.mxu0 0.0
    %199 = vmatpush1.msra.mxu0 0.0
    %200 = vmatprep.subr.mxu0 0.0
    %201 = vmatpush1.msra.mxu0 0.0
    %202 = vmatprep.subr.mxu0 0.0
    %203 = vmatpush1.msra.mxu0 0.0
    %204 = vmatprep.subr.mxu0 0.0
    %205 = vmatpush1.msra.mxu0 0.0
    %206 = vmatprep.subr.mxu0 0.0
    %207 = vmatpush1.msra.mxu0 0.0
    %208 = vmatprep.subr.mxu0 0.0
    %209 = vmatpush1.msra.mxu0 0.0
    %210 = vmatprep.subr.mxu0 0.0
    %211 = vmatpush1.msra.mxu0 0.0
    %212 = vmatprep.subr.mxu0 0.0
    %213 = vmatpush1.msra.mxu0 0.0
    %214 = vmatprep.subr.mxu0 0.0
    %215 = vmatpush1.msra.mxu0 0.0
    %216 = vmatprep.subr.mxu0 0.0
    %217 = vmatpush1.msra.mxu0 0.0
    %218 = vmatprep.subr.mxu0 0.0
    %219 = vmatpush1.msra.mxu0 0.0
    %220 = vmatprep.subr.mxu0 0.0
    %221 = vmatpush1.msra.mxu0 0.0
    %222 = vmatprep.subr.mxu0 0.0
    %223 = vmatpush1.msra.mxu0 0.0
    %224 = vmatprep.subr.mxu0 0.0
    %225 = vmatpush1.msra.mxu0 0.0
    %226 = vmatprep.subr.mxu0 0.0
    %227 = vmatpush1.msra.mxu0 0.0
    %228 = vmatprep.mubr.f32.mxu0 0.0
    %229 = vmatmul.mubr.f32.gmra.mrb[0].mxu0 %v162
    %v230 = vpop.f32.mrb[0].mxu0
    %v231 = vadd.f32 %v77, %v230
    %v232 = vpop.f32.mrb[0].mxu0
    %233 = vdwg.mxu0
    %234 = vrot.lane.b32.xlu0 %v159, 64
    %v235 = vpop.permute.xlu0 %234
    %v236 = vsel %vm79, %v235, 0
    %238 = vmatprep.subr.mxu0 0.0
    %239 = vmatpush1.msra.mxu0 %v62
    %240 = vmatprep.subr.mxu0 0.0
    %241 = vmatpush1.msra.mxu0 %v63
    %242 = vmatprep.subr.mxu0 0.0
    %243 = vmatpush1.msra.mxu0 %v64
    %244 = vmatprep.subr.mxu0 0.0
    %245 = vmatpush1.msra.mxu0 %v65
    %246 = vmatprep.subr.mxu0 0.0
    %247 = vmatpush1.msra.mxu0 0.0
    %248 = vmatprep.subr.mxu0 0.0
    %249 = vmatpush1.msra.mxu0 0.0
    %250 = vmatprep.subr.mxu0 0.0
    %251 = vmatpush1.msra.mxu0 0.0
    %252 = vmatprep.subr.mxu0 0.0
    %253 = vmatpush1.msra.mxu0 0.0
    %254 = vmatprep.subr.mxu0 0.0
    %255 = vmatpush1.msra.mxu0 0.0
    %256 = vmatprep.subr.mxu0 0.0
    %257 = vmatpush1.msra.mxu0 0.0
    %258 = vmatprep.subr.mxu0 0.0
    %259 = vmatpush1.msra.mxu0 0.0
    %260 = vmatprep.subr.mxu0 0.0
    %261 = vmatpush1.msra.mxu0 0.0
    %262 = vmatprep.subr.mxu0 0.0
    %263 = vmatpush1.msra.mxu0 0.0
    %264 = vmatprep.subr.mxu0 0.0
    %265 = vmatpush1.msra.mxu0 0.0
    %266 = vmatprep.subr.mxu0 0.0
    %267 = vmatpush1.msra.mxu0 0.0
    %268 = vmatprep.subr.mxu0 0.0
    %269 = vmatpush1.msra.mxu0 0.0
    %270 = vmatprep.subr.mxu0 0.0
    %271 = vmatpush1.msra.mxu0 0.0
    %272 = vmatprep.subr.mxu0 0.0
    %273 = vmatpush1.msra.mxu0 0.0
    %274 = vmatprep.subr.mxu0 0.0
    %275 = vmatpush1.msra.mxu0 0.0
    %276 = vmatprep.subr.mxu0 0.0
    %277 = vmatpush1.msra.mxu0 0.0
    %278 = vmatprep.subr.mxu0 0.0
    %279 = vmatpush1.msra.mxu0 0.0
    %280 = vmatprep.subr.mxu0 0.0
    %281 = vmatpush1.msra.mxu0 0.0
    %282 = vmatprep.subr.mxu0 0.0
    %283 = vmatpush1.msra.mxu0 0.0
    %284 = vmatprep.subr.mxu0 0.0
    %285 = vmatpush1.msra.mxu0 0.0
    %286 = vmatprep.subr.mxu0 0.0
    %287 = vmatpush1.msra.mxu0 0.0
    %288 = vmatprep.subr.mxu0 0.0
    %289 = vmatpush1.msra.mxu0 0.0
    %290 = vmatprep.subr.mxu0 0.0
    %291 = vmatpush1.msra.mxu0 0.0
    %292 = vmatprep.subr.mxu0 0.0
    %293 = vmatpush1.msra.mxu0 0.0
    %294 = vmatprep.subr.mxu0 0.0
    %295 = vmatpush1.msra.mxu0 0.0
    %296 = vmatprep.subr.mxu0 0.0
    %297 = vmatpush1.msra.mxu0 0.0
    %298 = vmatprep.subr.mxu0 0.0
    %299 = vmatpush1.msra.mxu0 0.0
    %300 = vmatprep.subr.mxu0 0.0
    %301 = vmatpush1.msra.mxu0 0.0
    %302 = vmatprep.mubr.f32.mxu0 0.0
    %303 = vmatmul.mubr.f32.gmra.mrb[0].mxu0 %v236
    %v304 = vpop.f32.mrb[0].mxu0
    %v305 = vadd.f32 %v77, %v304
    %v306 = vpop.f32.mrb[0].mxu0
    %307 = vdwg.mxu0
    %308 = vrot.lane.b32.xlu0 %v159, 32
    %v309 = vpop.permute.xlu0 %308
    %v310 = vsel %vm79, %v309, 0
    %312 = vmatprep.subr.mxu0 0.0
    %313 = vmatpush1.msra.mxu0 %v62
    %314 = vmatprep.subr.mxu0 0.0
    %315 = vmatpush1.msra.mxu0 %v63
    %316 = vmatprep.subr.mxu0 0.0
    %317 = vmatpush1.msra.mxu0 %v64
    %318 = vmatprep.subr.mxu0 0.0
    %319 = vmatpush1.msra.mxu0 %v65
    %320 = vmatprep.subr.mxu0 0.0
    %321 = vmatpush1.msra.mxu0 0.0
    %322 = vmatprep.subr.mxu0 0.0
    %323 = vmatpush1.msra.mxu0 0.0
    %324 = vmatprep.subr.mxu0 0.0
    %325 = vmatpush1.msra.mxu0 0.0
    %326 = vmatprep.subr.mxu0 0.0
    %327 = vmatpush1.msra.mxu0 0.0
    %328 = vmatprep.subr.mxu0 0.0
    %329 = vmatpush1.msra.mxu0 0.0
    %330 = vmatprep.subr.mxu0 0.0
    %331 = vmatpush1.msra.mxu0 0.0
    %332 = vmatprep.subr.mxu0 0.0
    %333 = vmatpush1.msra.mxu0 0.0
    %334 = vmatprep.subr.mxu0 0.0
    %335 = vmatpush1.msra.mxu0 0.0
    %336 = vmatprep.subr.mxu0 0.0
    %337 = vmatpush1.msra.mxu0 0.0
    %338 = vmatprep.subr.mxu0 0.0
    %339 = vmatpush1.msra.mxu0 0.0
    %340 = vmatprep.subr.mxu0 0.0
    %341 = vmatpush1.msra.mxu0 0.0
    %342 = vmatprep.subr.mxu0 0.0
    %343 = vmatpush1.msra.mxu0 0.0
    %344 = vmatprep.subr.mxu0 0.0
    %345 = vmatpush1.msra.mxu0 0.0
    %346 = vmatprep.subr.mxu0 0.0
    %347 = vmatpush1.msra.mxu0 0.0
    %348 = vmatprep.subr.mxu0 0.0
    %349 = vmatpush1.msra.mxu0 0.0
    %350 = vmatprep.subr.mxu0 0.0
    %351 = vmatpush1.msra.mxu0 0.0
    %352 = vmatprep.subr.mxu0 0.0
    %353 = vmatpush1.msra.mxu0 0.0
    %354 = vmatprep.subr.mxu0 0.0
    %355 = vmatpush1.msra.mxu0 0.0
    %356 = vmatprep.subr.mxu0 0.0
    %357 = vmatpush1.msra.mxu0 0.0
    %358 = vmatprep.subr.mxu0 0.0
    %359 = vmatpush1.msra.mxu0 0.0
    %360 = vmatprep.subr.mxu0 0.0
    %361 = vmatpush1.msra.mxu0 0.0
    %362 = vmatprep.subr.mxu0 0.0
    %363 = vmatpush1.msra.mxu0 0.0
    %364 = vmatprep.subr.mxu0 0.0
    %365 = vmatpush1.msra.mxu0 0.0
    %366 = vmatprep.subr.mxu0 0.0
    %367 = vmatpush1.msra.mxu0 0.0
    %368 = vmatprep.subr.mxu0 0.0
    %369 = vmatpush1.msra.mxu0 0.0
    %370 = vmatprep.subr.mxu0 0.0
    %371 = vmatpush1.msra.mxu0 0.0
    %372 = vmatprep.subr.mxu0 0.0
    %373 = vmatpush1.msra.mxu0 0.0
    %374 = vmatprep.subr.mxu0 0.0
    %375 = vmatpush1.msra.mxu0 0.0
    %376 = vmatprep.mubr.f32.mxu0 0.0
    %377 = vmatmul.mubr.f32.gmra.mrb[0].mxu0 %v310
    %v378 = vpop.f32.mrb[0].mxu0
    %v379 = vadd.f32 %v77, %v378
    %v380 = vpop.f32.mrb[0].mxu0
    %381 = vdwg.mxu0
    %v382 = vcombine.high %v159, %v159
    %v383 = vsel %vm79, %v382, 0
    %385 = vmatprep.subr.mxu0 0.0
    %386 = vmatpush1.msra.mxu0 %v62
    %387 = vmatprep.subr.mxu0 0.0
    %388 = vmatpush1.msra.mxu0 %v63
    %389 = vmatprep.subr.mxu0 0.0
    %390 = vmatpush1.msra.mxu0 %v64
    %391 = vmatprep.subr.mxu0 0.0
    %392 = vmatpush1.msra.mxu0 %v65
    %393 = vmatprep.subr.mxu0 0.0
    %394 = vmatpush1.msra.mxu0 0.0
    %395 = vmatprep.subr.mxu0 0.0
    %396 = vmatpush1.msra.mxu0 0.0
    %397 = vmatprep.subr.mxu0 0.0
    %398 = vmatpush1.msra.mxu0 0.0
    %399 = vmatprep.subr.mxu0 0.0
    %400 = vmatpush1.msra.mxu0 0.0
    %401 = vmatprep.subr.mxu0 0.0
    %402 = vmatpush1.msra.mxu0 0.0
    %403 = vmatprep.subr.mxu0 0.0
    %404 = vmatpush1.msra.mxu0 0.0
    %405 = vmatprep.subr.mxu0 0.0
    %406 = vmatpush1.msra.mxu0 0.0
    %407 = vmatprep.subr.mxu0 0.0
    %408 = vmatpush1.msra.mxu0 0.0
    %409 = vmatprep.subr.mxu0 0.0
    %410 = vmatpush1.msra.mxu0 0.0
    %411 = vmatprep.subr.mxu0 0.0
    %412 = vmatpush1.msra.mxu0 0.0
    %413 = vmatprep.subr.mxu0 0.0
    %414 = vmatpush1.msra.mxu0 0.0
    %415 = vmatprep.subr.mxu0 0.0
    %416 = vmatpush1.msra.mxu0 0.0
    %417 = vmatprep.subr.mxu0 0.0
    %418 = vmatpush1.msra.mxu0 0.0
    %419 = vmatprep.subr.mxu0 0.0
    %420 = vmatpush1.msra.mxu0 0.0
    %421 = vmatprep.subr.mxu0 0.0
    %422 = vmatpush1.msra.mxu0 0.0
    %423 = vmatprep.subr.mxu0 0.0
    %424 = vmatpush1.msra.mxu0 0.0
    %425 = vmatprep.subr.mxu0 0.0
    %426 = vmatpush1.msra.mxu0 0.0
    %427 = vmatprep.subr.mxu0 0.0
    %428 = vmatpush1.msra.mxu0 0.0
    %429 = vmatprep.subr.mxu0 0.0
    %430 = vmatpush1.msra.mxu0 0.0
    %431 = vmatprep.subr.mxu0 0.0
    %432 = vmatpush1.msra.mxu0 0.0
    %433 = vmatprep.subr.mxu0 0.0
    %434 = vmatpush1.msra.mxu0 0.0
    %435 = vmatprep.subr.mxu0 0.0
    %436 = vmatpush1.msra.mxu0 0.0
    %437 = vmatprep.subr.mxu0 0.0
    %438 = vmatpush1.msra.mxu0 0.0
    %439 = vmatprep.subr.mxu0 0.0
    %440 = vmatpush1.msra.mxu0 0.0
    %441 = vmatprep.subr.mxu0 0.0
    %442 = vmatpush1.msra.mxu0 0.0
    %443 = vmatprep.subr.mxu0 0.0
    %444 = vmatpush1.msra.mxu0 0.0
    %445 = vmatprep.subr.mxu0 0.0
    %446 = vmatpush1.msra.mxu0 0.0
    %447 = vmatprep.subr.mxu0 0.0
    %448 = vmatpush1.msra.mxu0 0.0
    %449 = vmatprep.mubr.f32.mxu0 0.0
    %450 = vmatmul.mubr.f32.gmra.mrb[0].mxu0 %v383
    %v451 = vpop.f32.mrb[0].mxu0
    %v452 = vadd.f32 %v77, %v451
    %v453 = vpop.f32.mrb[0].mxu0
    %454 = vdwg.mxu0
    %455 = vrot.lane.b32.xlu0 %v382, 96
    %v456 = vpop.permute.xlu0 %455
    %v457 = vsel %vm79, %v456, 0
    %459 = vmatprep.subr.mxu0 0.0
    %460 = vmatpush1.msra.mxu0 %v62
    %461 = vmatprep.subr.mxu0 0.0
    %462 = vmatpush1.msra.mxu0 %v63
    %463 = vmatprep.subr.mxu0 0.0
    %464 = vmatpush1.msra.mxu0 %v64
    %465 = vmatprep.subr.mxu0 0.0
    %466 = vmatpush1.msra.mxu0 %v65
    %467 = vmatprep.subr.mxu0 0.0
    %468 = vmatpush1.msra.mxu0 0.0
    %469 = vmatprep.subr.mxu0 0.0
    %470 = vmatpush1.msra.mxu0 0.0
    %471 = vmatprep.subr.mxu0 0.0
    %472 = vmatpush1.msra.mxu0 0.0
    %473 = vmatprep.subr.mxu0 0.0
    %474 = vmatpush1.msra.mxu0 0.0
    %475 = vmatprep.subr.mxu0 0.0
    %476 = vmatpush1.msra.mxu0 0.0
    %477 = vmatprep.subr.mxu0 0.0
    %478 = vmatpush1.msra.mxu0 0.0
    %479 = vmatprep.subr.mxu0 0.0
    %480 = vmatpush1.msra.mxu0 0.0
    %481 = vmatprep.subr.mxu0 0.0
    %482 = vmatpush1.msra.mxu0 0.0
    %483 = vmatprep.subr.mxu0 0.0
    %484 = vmatpush1.msra.mxu0 0.0
    %485 = vmatprep.subr.mxu0 0.0
    %486 = vmatpush1.msra.mxu0 0.0
    %487 = vmatprep.subr.mxu0 0.0
    %488 = vmatpush1.msra.mxu0 0.0
    %489 = vmatprep.subr.mxu0 0.0
    %490 = vmatpush1.msra.mxu0 0.0
    %491 = vmatprep.subr.mxu0 0.0
    %492 = vmatpush1.msra.mxu0 0.0
    %493 = vmatprep.subr.mxu0 0.0
    %494 = vmatpush1.msra.mxu0 0.0
    %495 = vmatprep.subr.mxu0 0.0
    %496 = vmatpush1.msra.mxu0 0.0
    %497 = vmatprep.subr.mxu0 0.0
    %498 = vmatpush1.msra.mxu0 0.0
    %499 = vmatprep.subr.mxu0 0.0
    %500 = vmatpush1.msra.mxu0 0.0
    %501 = vmatprep.subr.mxu0 0.0
    %502 = vmatpush1.msra.mxu0 0.0
    %503 = vmatprep.subr.mxu0 0.0
    %504 = vmatpush1.msra.mxu0 0.0
    %505 = vmatprep.subr.mxu0 0.0
    %506 = vmatpush1.msra.mxu0 0.0
    %507 = vmatprep.subr.mxu0 0.0
    %508 = vmatpush1.msra.mxu0 0.0
    %509 = vmatprep.subr.mxu0 0.0
    %510 = vmatpush1.msra.mxu0 0.0
    %511 = vmatprep.subr.mxu0 0.0
    %512 = vmatpush1.msra.mxu0 0.0
    %513 = vmatprep.subr.mxu0 0.0
    %514 = vmatpush1.msra.mxu0 0.0
    %515 = vmatprep.subr.mxu0 0.0
    %516 = vmatpush1.msra.mxu0 0.0
    %517 = vmatprep.subr.mxu0 0.0
    %518 = vmatpush1.msra.mxu0 0.0
    %519 = vmatprep.subr.mxu0 0.0
    %520 = vmatpush1.msra.mxu0 0.0
    %521 = vmatprep.subr.mxu0 0.0
    %522 = vmatpush1.msra.mxu0 0.0
    %523 = vmatprep.mubr.f32.mxu0 0.0
    %524 = vmatmul.mubr.f32.gmra.mrb[0].mxu0 %v457
    %v525 = vpop.f32.mrb[0].mxu0
    %v526 = vadd.f32 %v77, %v525
    %v527 = vpop.f32.mrb[0].mxu0
    %528 = vdwg.mxu0
    %529 = vrot.lane.b32.xlu0 %v382, 64
    %v530 = vpop.permute.xlu0 %529
    %v531 = vsel %vm79, %v530, 0
    %533 = vmatprep.subr.mxu0 0.0
    %534 = vmatpush1.msra.mxu0 %v62
    %535 = vmatprep.subr.mxu0 0.0
    %536 = vmatpush1.msra.mxu0 %v63
    %537 = vmatprep.subr.mxu0 0.0
    %538 = vmatpush1.msra.mxu0 %v64
    %539 = vmatprep.subr.mxu0 0.0
    %540 = vmatpush1.msra.mxu0 %v65
    %541 = vmatprep.subr.mxu0 0.0
    %542 = vmatpush1.msra.mxu0 0.0
    %543 = vmatprep.subr.mxu0 0.0
    %544 = vmatpush1.msra.mxu0 0.0
    %545 = vmatprep.subr.mxu0 0.0
    %546 = vmatpush1.msra.mxu0 0.0
    %547 = vmatprep.subr.mxu0 0.0
    %548 = vmatpush1.msra.mxu0 0.0
    %549 = vmatprep.subr.mxu0 0.0
    %550 = vmatpush1.msra.mxu0 0.0
    %551 = vmatprep.subr.mxu0 0.0
    %552 = vmatpush1.msra.mxu0 0.0
    %553 = vmatprep.subr.mxu0 0.0
    %554 = vmatpush1.msra.mxu0 0.0
    %555 = vmatprep.subr.mxu0 0.0
    %556 = vmatpush1.msra.mxu0 0.0
    %557 = vmatprep.subr.mxu0 0.0
    %558 = vmatpush1.msra.mxu0 0.0
    %559 = vmatprep.subr.mxu0 0.0
    %560 = vmatpush1.msra.mxu0 0.0
    %561 = vmatprep.subr.mxu0 0.0
    %562 = vmatpush1.msra.mxu0 0.0
    %563 = vmatprep.subr.mxu0 0.0
    %564 = vmatpush1.msra.mxu0 0.0
    %565 = vmatprep.subr.mxu0 0.0
    %566 = vmatpush1.msra.mxu0 0.0
    %567 = vmatprep.subr.mxu0 0.0
    %568 = vmatpush1.msra.mxu0 0.0
    %569 = vmatprep.subr.mxu0 0.0
    %570 = vmatpush1.msra.mxu0 0.0
    %571 = vmatprep.subr.mxu0 0.0
    %572 = vmatpush1.msra.mxu0 0.0
    %573 = vmatprep.subr.mxu0 0.0
    %574 = vmatpush1.msra.mxu0 0.0
    %575 = vmatprep.subr.mxu0 0.0
    %576 = vmatpush1.msra.mxu0 0.0
    %577 = vmatprep.subr.mxu0 0.0
    %578 = vmatpush1.msra.mxu0 0.0
    %579 = vmatprep.subr.mxu0 0.0
    %580 = vmatpush1.msra.mxu0 0.0
    %581 = vmatprep.subr.mxu0 0.0
    %582 = vmatpush1.msra.mxu0 0.0
    %583 = vmatprep.subr.mxu0 0.0
    %584 = vmatpush1.msra.mxu0 0.0
    %585 = vmatprep.subr.mxu0 0.0
    %586 = vmatpush1.msra.mxu0 0.0
    %587 = vmatprep.subr.mxu0 0.0
    %588 = vmatpush1.msra.mxu0 0.0
    %589 = vmatprep.subr.mxu0 0.0
    %590 = vmatpush1.msra.mxu0 0.0
    %591 = vmatprep.subr.mxu0 0.0
    %592 = vmatpush1.msra.mxu0 0.0
    %593 = vmatprep.subr.mxu0 0.0
    %594 = vmatpush1.msra.mxu0 0.0
    %595 = vmatprep.subr.mxu0 0.0
    %596 = vmatpush1.msra.mxu0 0.0
    %597 = vmatprep.mubr.f32.mxu0 0.0
    %598 = vmatmul.mubr.f32.gmra.mrb[0].mxu0 %v531
    %v599 = vpop.f32.mrb[0].mxu0
    %v600 = vadd.f32 %v77, %v599
    %v601 = vpop.f32.mrb[0].mxu0
    %602 = vdwg.mxu0
    %603 = vrot.lane.b32.xlu0 %v382, 32
    %v604 = vpop.permute.xlu0 %603
    %v605 = vsel %vm79, %v604, 0
    %607 = vmatprep.subr.mxu0 0.0
    %608 = vmatpush1.msra.mxu0 %v62
    %609 = vmatprep.subr.mxu0 0.0
    %610 = vmatpush1.msra.mxu0 %v63
    %611 = vmatprep.subr.mxu0 0.0
    %612 = vmatpush1.msra.mxu0 %v64
    %613 = vmatprep.subr.mxu0 0.0
    %614 = vmatpush1.msra.mxu0 %v65
    %615 = vmatprep.subr.mxu0 0.0
    %616 = vmatpush1.msra.mxu0 0.0
    %617 = vmatprep.subr.mxu0 0.0
    %618 = vmatpush1.msra.mxu0 0.0
    %619 = vmatprep.subr.mxu0 0.0
    %620 = vmatpush1.msra.mxu0 0.0
    %621 = vmatprep.subr.mxu0 0.0
    %622 = vmatpush1.msra.mxu0 0.0
    %623 = vmatprep.subr.mxu0 0.0
    %624 = vmatpush1.msra.mxu0 0.0
    %625 = vmatprep.subr.mxu0 0.0
    %626 = vmatpush1.msra.mxu0 0.0
    %627 = vmatprep.subr.mxu0 0.0
    %628 = vmatpush1.msra.mxu0 0.0
    %629 = vmatprep.subr.mxu0 0.0
    %630 = vmatpush1.msra.mxu0 0.0
    %631 = vmatprep.subr.mxu0 0.0
    %632 = vmatpush1.msra.mxu0 0.0
    %633 = vmatprep.subr.mxu0 0.0
    %634 = vmatpush1.msra.mxu0 0.0
    %635 = vmatprep.subr.mxu0 0.0
    %636 = vmatpush1.msra.mxu0 0.0
    %637 = vmatprep.subr.mxu0 0.0
    %638 = vmatpush1.msra.mxu0 0.0
    %639 = vmatprep.subr.mxu0 0.0
    %640 = vmatpush1.msra.mxu0 0.0
    %641 = vmatprep.subr.mxu0 0.0
    %642 = vmatpush1.msra.mxu0 0.0
    %643 = vmatprep.subr.mxu0 0.0
    %644 = vmatpush1.msra.mxu0 0.0
    %645 = vmatprep.subr.mxu0 0.0
    %646 = vmatpush1.msra.mxu0 0.0
    %647 = vmatprep.subr.mxu0 0.0
    %648 = vmatpush1.msra.mxu0 0.0
    %649 = vmatprep.subr.mxu0 0.0
    %650 = vmatpush1.msra.mxu0 0.0
    %651 = vmatprep.subr.mxu0 0.0
    %652 = vmatpush1.msra.mxu0 0.0
    %653 = vmatprep.subr.mxu0 0.0
    %654 = vmatpush1.msra.mxu0 0.0
    %655 = vmatprep.subr.mxu0 0.0
    %656 = vmatpush1.msra.mxu0 0.0
    %657 = vmatprep.subr.mxu0 0.0
    %658 = vmatpush1.msra.mxu0 0.0
    %659 = vmatprep.subr.mxu0 0.0
    %660 = vmatpush1.msra.mxu0 0.0
    %661 = vmatprep.subr.mxu0 0.0
    %662 = vmatpush1.msra.mxu0 0.0
    %663 = vmatprep.subr.mxu0 0.0
    %664 = vmatpush1.msra.mxu0 0.0
    %665 = vmatprep.subr.mxu0 0.0
    %666 = vmatpush1.msra.mxu0 0.0
    %667 = vmatprep.subr.mxu0 0.0
    %668 = vmatpush1.msra.mxu0 0.0
    %669 = vmatprep.subr.mxu0 0.0
    %670 = vmatpush1.msra.mxu0 0.0
    %671 = vmatprep.mubr.f32.mxu0 0.0
    %672 = vmatmul.mubr.f32.gmra.mrb[0].mxu0 %v605
    %v673 = vpop.f32.mrb[0].mxu0
    %v674 = vadd.f32 %v77, %v673
    %v675 = vpop.f32.mrb[0].mxu0
    %676 = vdwg.mxu0
    %v678 = vsel %vm79, 0, 0
    %680 = vmatprep.subr.bf16.mxu0 0
    %681 = vmatpush1.bf16.msra.mxu0 %v70
    %682 = vmatprep.subr.bf16.mxu0 0
    %683 = vmatpush1.bf16.msra.mxu0 %v71
    %684 = vmatprep.subr.bf16.mxu0 0
    %685 = vmatpush1.bf16.msra.mxu0 0
    %686 = vmatprep.subr.bf16.mxu0 0
    %687 = vmatpush1.bf16.msra.mxu0 0
    %688 = vmatprep.subr.bf16.mxu0 0
    %689 = vmatpush1.bf16.msra.mxu0 0
    %690 = vmatprep.subr.bf16.mxu0 0
    %691 = vmatpush1.bf16.msra.mxu0 0
    %692 = vmatprep.subr.bf16.mxu0 0
    %693 = vmatpush1.bf16.msra.mxu0 0
    %694 = vmatprep.subr.bf16.mxu0 0
    %695 = vmatpush1.bf16.msra.mxu0 0
    %696 = vmatprep.subr.bf16.mxu0 0
    %697 = vmatpush1.bf16.msra.mxu0 0
    %698 = vmatprep.subr.bf16.mxu0 0
    %699 = vmatpush1.bf16.msra.mxu0 0
    %700 = vmatprep.subr.bf16.mxu0 0
    %701 = vmatpush1.bf16.msra.mxu0 0
    %702 = vmatprep.subr.bf16.mxu0 0
    %703 = vmatpush1.bf16.msra.mxu0 0
    %704 = vmatprep.subr.bf16.mxu0 0
    %705 = vmatpush1.bf16.msra.mxu0 0
    %706 = vmatprep.subr.bf16.mxu0 0
    %707 = vmatpush1.bf16.msra.mxu0 0
    %708 = vmatprep.subr.bf16.mxu0 0
    %709 = vmatpush1.bf16.msra.mxu0 0
    %710 = vmatprep.subr.bf16.mxu0 0
    %711 = vmatpush1.bf16.msra.mxu0 0
    %712 = vmatprep.mubr.bf16.mxu0 0
    %713 = vmatmul.mubr.bf16.gmra.mrb[0].mxu0 %v678
    %v714 = vpop.f32.mrb[0].mxu0
    %v715 = vadd.f32 0.0, %v714
    %v716 = vpop.f32.mrb[0].mxu0
    %v717 = vpop.f32.mrb[0].mxu0
    %v718 = vpop.f32.mrb[0].mxu0
    %719 = vdwg.mxu0
    %v720 = vadd.f32 %v150, %v715
    %v721 = vxor.u32 %v720, 2147483648
    %v722 = vmul.f32 %v721, 1.442695
    %v723 = vpow.pop %v722
    %v724 = vadd.f32 %v723, 1.0
    %v725 = vrcp.pop %v724
    %v726 = vmul.f32 1.0, %v725
    %v727 = vtanh.pop %v720
    %v728 = vmul.f32 %v726, 0.0
    %730 = vrot.lane.b32.xlu0 %v727, 64
    %v731 = vpop.permute.xlu0 %730
    %v733 = vmul.f32 %v726, %v731
    %735 = vrot.lane.b32.xlu0 %v733, 32
    %v736 = vpop.permute.xlu0 %735
    %v738 = vadd.f32 %v728, %v736
    %v739 = vtanh.pop %v738
    %741 = vrot.lane.b32.xlu0 %v739, 64
    %v742 = vpop.permute.xlu0 %741
    %v744 = vmul.f32 %v726, %v742
    %v745 = vpack.c.bf16 %v744, %v744
    %747 = vrot.lane.b32.xlu0 %v745, 32
    %v748 = vpop.permute.xlu0 %747
    %v750 = vsel %vm79, %v748, 0
    %752 = vmatprep.subr.bf16.mxu0 0
    %753 = vmatpush1.bf16.msra.mxu0 %v70
    %754 = vmatprep.subr.bf16.mxu0 0
    %755 = vmatpush1.bf16.msra.mxu0 %v71
    %756 = vmatprep.subr.bf16.mxu0 0
    %757 = vmatpush1.bf16.msra.mxu0 0
    %758 = vmatprep.subr.bf16.mxu0 0
    %759 = vmatpush1.bf16.msra.mxu0 0
    %760 = vmatprep.subr.bf16.mxu0 0
    %761 = vmatpush1.bf16.msra.mxu0 0
    %762 = vmatprep.subr.bf16.mxu0 0
    %763 = vmatpush1.bf16.msra.mxu0 0
    %764 = vmatprep.subr.bf16.mxu0 0
    %765 = vmatpush1.bf16.msra.mxu0 0
    %766 = vmatprep.subr.bf16.mxu0 0
    %767 = vmatpush1.bf16.msra.mxu0 0
    %768 = vmatprep.subr.bf16.mxu0 0
    %769 = vmatpush1.bf16.msra.mxu0 0
    %770 = vmatprep.subr.bf16.mxu0 0
    %771 = vmatpush1.bf16.msra.mxu0 0
    %772 = vmatprep.subr.bf16.mxu0 0
    %773 = vmatpush1.bf16.msra.mxu0 0
    %774 = vmatprep.subr.bf16.mxu0 0
    %775 = vmatpush1.bf16.msra.mxu0 0
    %776 = vmatprep.subr.bf16.mxu0 0
    %777 = vmatpush1.bf16.msra.mxu0 0
    %778 = vmatprep.subr.bf16.mxu0 0
    %779 = vmatpush1.bf16.msra.mxu0 0
    %780 = vmatprep.subr.bf16.mxu0 0
    %781 = vmatpush1.bf16.msra.mxu0 0
    %782 = vmatprep.subr.bf16.mxu0 0
    %783 = vmatpush1.bf16.msra.mxu0 0
    %784 = vmatprep.mubr.bf16.mxu0 0
    %785 = vmatmul.mubr.bf16.gmra.mrb[0].mxu0 %v750
    %v786 = vpop.f32.mrb[0].mxu0
    %v787 = vadd.f32 0.0, %v786
    %v788 = vpop.f32.mrb[0].mxu0
    %v789 = vpop.f32.mrb[0].mxu0
    %v790 = vpop.f32.mrb[0].mxu0
    %791 = vdwg.mxu0
    %v792 = vadd.f32 %v231, %v787
    %v793 = vxor.u32 %v792, 2147483648
    %v794 = vmul.f32 %v793, 1.442695
    %v795 = vpow.pop %v794
    %v796 = vadd.f32 %v795, 1.0
    %v797 = vrcp.pop %v796
    %v798 = vmul.f32 1.0, %v797
    %v799 = vtanh.pop %v792
    %v800 = vmul.f32 %v798, %v738
    %802 = vrot.lane.b32.xlu0 %v799, 64
    %v803 = vpop.permute.xlu0 %802
    %v805 = vmul.f32 %v798, %v803
    %807 = vrot.lane.b32.xlu0 %v805, 32
    %v808 = vpop.permute.xlu0 %807
    %v810 = vadd.f32 %v800, %v808
    %v811 = vtanh.pop %v810
    %813 = vrot.lane.b32.xlu0 %v811, 64
    %v814 = vpop.permute.xlu0 %813
    %v816 = vmul.f32 %v798, %v814
    %v817 = vpack.c.bf16 %v816, %v816
    %819 = vrot.lane.b32.xlu0 %v817, 32
    %v820 = vpop.permute.xlu0 %819
    %v822 = vsel %vm79, %v820, 0
    %824 = vmatprep.subr.bf16.mxu0 0
    %825 = vmatpush1.bf16.msra.mxu0 %v70
    %826 = vmatprep.subr.bf16.mxu0 0
    %827 = vmatpush1.bf16.msra.mxu0 %v71
    %828 = vmatprep.subr.bf16.mxu0 0
    %829 = vmatpush1.bf16.msra.mxu0 0
    %830 = vmatprep.subr.bf16.mxu0 0
    %831 = vmatpush1.bf16.msra.mxu0 0
    %832 = vmatprep.subr.bf16.mxu0 0
    %833 = vmatpush1.bf16.msra.mxu0 0
    %834 = vmatprep.subr.bf16.mxu0 0
    %835 = vmatpush1.bf16.msra.mxu0 0
    %836 = vmatprep.subr.bf16.mxu0 0
    %837 = vmatpush1.bf16.msra.mxu0 0
    %838 = vmatprep.subr.bf16.mxu0 0
    %839 = vmatpush1.bf16.msra.mxu0 0
    %840 = vmatprep.subr.bf16.mxu0 0
    %841 = vmatpush1.bf16.msra.mxu0 0
    %842 = vmatprep.subr.bf16.mxu0 0
    %843 = vmatpush1.bf16.msra.mxu0 0
    %844 = vmatprep.subr.bf16.mxu0 0
    %845 = vmatpush1.bf16.msra.mxu0 0
    %846 = vmatprep.subr.bf16.mxu0 0
    %847 = vmatpush1.bf16.msra.mxu0 0
    %848 = vmatprep.subr.bf16.mxu0 0
    %849 = vmatpush1.bf16.msra.mxu0 0
    %850 = vmatprep.subr.bf16.mxu0 0
    %851 = vmatpush1.bf16.msra.mxu0 0
    %852 = vmatprep.subr.bf16.mxu0 0
    %853 = vmatpush1.bf16.msra.mxu0 0
    %854 = vmatprep.subr.bf16.mxu0 0
    %855 = vmatpush1.bf16.msra.mxu0 0
    %856 = vmatprep.mubr.bf16.mxu0 0
    %857 = vmatmul.mubr.bf16.gmra.mrb[0].mxu0 %v822
    %v858 = vpop.f32.mrb[0].mxu0
    %v859 = vadd.f32 0.0, %v858
    %v860 = vpop.f32.mrb[0].mxu0
    %v861 = vpop.f32.mrb[0].mxu0
    %v862 = vpop.f32.mrb[0].mxu0
    %863 = vdwg.mxu0
    %v864 = vadd.f32 %v305, %v859
    %v865 = vxor.u32 %v864, 2147483648
    %v866 = vmul.f32 %v865, 1.442695
    %v867 = vpow.pop %v866
    %v868 = vadd.f32 %v867, 1.0
    %v869 = vrcp.pop %v868
    %v870 = vmul.f32 1.0, %v869
    %v871 = vtanh.pop %v864
    %v872 = vmul.f32 %v870, %v810
    %874 = vrot.lane.b32.xlu0 %v871, 64
    %v875 = vpop.permute.xlu0 %874
    %v877 = vmul.f32 %v870, %v875
    %879 = vrot.lane.b32.xlu0 %v877, 32
    %v880 = vpop.permute.xlu0 %879
    %v882 = vadd.f32 %v872, %v880
    %v883 = vtanh.pop %v882
    %885 = vrot.lane.b32.xlu0 %v883, 64
    %v886 = vpop.permute.xlu0 %885
    %v888 = vmul.f32 %v870, %v886
    %v889 = vpack.c.bf16 %v888, %v888
    %891 = vrot.lane.b32.xlu0 %v889, 32
    %v892 = vpop.permute.xlu0 %891
    %v894 = vsel %vm79, %v892, 0
    %896 = vmatprep.subr.bf16.mxu0 0
    %897 = vmatpush1.bf16.msra.mxu0 %v70
    %898 = vmatprep.subr.bf16.mxu0 0
    %899 = vmatpush1.bf16.msra.mxu0 %v71
    %900 = vmatprep.subr.bf16.mxu0 0
    %901 = vmatpush1.bf16.msra.mxu0 0
    %902 = vmatprep.subr.bf16.mxu0 0
    %903 = vmatpush1.bf16.msra.mxu0 0
    %904 = vmatprep.subr.bf16.mxu0 0
    %905 = vmatpush1.bf16.msra.mxu0 0
    %906 = vmatprep.subr.bf16.mxu0 0
    %907 = vmatpush1.bf16.msra.mxu0 0
    %908 = vmatprep.subr.bf16.mxu0 0
    %909 = vmatpush1.bf16.msra.mxu0 0
    %910 = vmatprep.subr.bf16.mxu0 0
    %911 = vmatpush1.bf16.msra.mxu0 0
    %912 = vmatprep.subr.bf16.mxu0 0
    %913 = vmatpush1.bf16.msra.mxu0 0
    %914 = vmatprep.subr.bf16.mxu0 0
    %915 = vmatpush1.bf16.msra.mxu0 0
    %916 = vmatprep.subr.bf16.mxu0 0
    %917 = vmatpush1.bf16.msra.mxu0 0
    %918 = vmatprep.subr.bf16.mxu0 0
    %919 = vmatpush1.bf16.msra.mxu0 0
    %920 = vmatprep.subr.bf16.mxu0 0
    %921 = vmatpush1.bf16.msra.mxu0 0
    %922 = vmatprep.subr.bf16.mxu0 0
    %923 = vmatpush1.bf16.msra.mxu0 0
    %924 = vmatprep.subr.bf16.mxu0 0
    %925 = vmatpush1.bf16.msra.mxu0 0
    %926 = vmatprep.subr.bf16.mxu0 0
    %927 = vmatpush1.bf16.msra.mxu0 0
    %928 = vmatprep.mubr.bf16.mxu0 0
    %929 = vmatmul.mubr.bf16.gmra.mrb[0].mxu0 %v894
    %v930 = vpop.f32.mrb[0].mxu0
    %v931 = vadd.f32 0.0, %v930
    %v932 = vpop.f32.mrb[0].mxu0
    %v933 = vpop.f32.mrb[0].mxu0
    %v934 = vpop.f32.mrb[0].mxu0
    %935 = vdwg.mxu0
    %v936 = vadd.f32 %v379, %v931
    %v937 = vxor.u32 %v936, 2147483648
    %v938 = vmul.f32 %v937, 1.442695
    %v939 = vpow.pop %v938
    %v940 = vadd.f32 %v939, 1.0
    %v941 = vrcp.pop %v940
    %v942 = vmul.f32 1.0, %v941
    %v943 = vtanh.pop %v936
    %v944 = vmul.f32 %v942, %v882
    %946 = vrot.lane.b32.xlu0 %v943, 64
    %v947 = vpop.permute.xlu0 %946
    %v949 = vmul.f32 %v942, %v947
    %951 = vrot.lane.b32.xlu0 %v949, 32
    %v952 = vpop.permute.xlu0 %951
    %v954 = vadd.f32 %v944, %v952
    %v955 = vtanh.pop %v954
    %957 = vrot.lane.b32.xlu0 %v955, 64
    %v958 = vpop.permute.xlu0 %957
    %v960 = vmul.f32 %v942, %v958
    %v961 = vpack.c.bf16 %v960, %v960
    %963 = vrot.lane.b32.xlu0 %v961, 32
    %v964 = vpop.permute.xlu0 %963
    %v966 = vsel %vm79, %v964, 0
    %968 = vmatprep.subr.bf16.mxu0 0
    %969 = vmatpush1.bf16.msra.mxu0 %v70
    %970 = vmatprep.subr.bf16.mxu0 0
    %971 = vmatpush1.bf16.msra.mxu0 %v71
    %972 = vmatprep.subr.bf16.mxu0 0
    %973 = vmatpush1.bf16.msra.mxu0 0
    %974 = vmatprep.subr.bf16.mxu0 0
    %975 = vmatpush1.bf16.msra.mxu0 0
    %976 = vmatprep.subr.bf16.mxu0 0
    %977 = vmatpush1.bf16.msra.mxu0 0
    %978 = vmatprep.subr.bf16.mxu0 0
    %979 = vmatpush1.bf16.msra.mxu0 0
    %980 = vmatprep.subr.bf16.mxu0 0
    %981 = vmatpush1.bf16.msra.mxu0 0
    %982 = vmatprep.subr.bf16.mxu0 0
    %983 = vmatpush1.bf16.msra.mxu0 0
    %984 = vmatprep.subr.bf16.mxu0 0
    %985 = vmatpush1.bf16.msra.mxu0 0
    %986 = vmatprep.subr.bf16.mxu0 0
    %987 = vmatpush1.bf16.msra.mxu0 0
    %988 = vmatprep.subr.bf16.mxu0 0
    %989 = vmatpush1.bf16.msra.mxu0 0
    %990 = vmatprep.subr.bf16.mxu0 0
    %991 = vmatpush1.bf16.msra.mxu0 0
    %992 = vmatprep.subr.bf16.mxu0 0
    %993 = vmatpush1.bf16.msra.mxu0 0
    %994 = vmatprep.subr.bf16.mxu0 0
    %995 = vmatpush1.bf16.msra.mxu0 0
    %996 = vmatprep.subr.bf16.mxu0 0
    %997 = vmatpush1.bf16.msra.mxu0 0
    %998 = vmatprep.subr.bf16.mxu0 0
    %999 = vmatpush1.bf16.msra.mxu0 0
    %1000 = vmatprep.mubr.bf16.mxu0 0
    %1001 = vmatmul.mubr.bf16.gmra.mrb[0].mxu0 %v966
    %v1002 = vpop.f32.mrb[0].mxu0
    %v1003 = vadd.f32 0.0, %v1002
    %v1004 = vpop.f32.mrb[0].mxu0
    %v1005 = vpop.f32.mrb[0].mxu0
    %v1006 = vpop.f32.mrb[0].mxu0
    %1007 = vdwg.mxu0
    %v1008 = vadd.f32 %v452, %v1003
    %v1009 = vxor.u32 %v1008, 2147483648
    %v1010 = vmul.f32 %v1009, 1.442695
    %v1011 = vpow.pop %v1010
    %v1012 = vadd.f32 %v1011, 1.0
    %v1013 = vrcp.pop %v1012
    %v1014 = vmul.f32 1.0, %v1013
    %v1015 = vtanh.pop %v1008
    %v1016 = vmul.f32 %v1014, %v954
    %1018 = vrot.lane.b32.xlu0 %v1015, 64
    %v1019 = vpop.permute.xlu0 %1018
    %v1021 = vmul.f32 %v1014, %v1019
    %1023 = vrot.lane.b32.xlu0 %v1021, 32
    %v1024 = vpop.permute.xlu0 %1023
    %v1026 = vadd.f32 %v1016, %v1024
    %v1027 = vtanh.pop %v1026
    %1029 = vrot.lane.b32.xlu0 %v1027, 64
    %v1030 = vpop.permute.xlu0 %1029
    %v1032 = vmul.f32 %v1014, %v1030
    %v1033 = vpack.c.bf16 %v1032, %v1032
    %1035 = vrot.lane.b32.xlu0 %v1033, 32
    %v1036 = vpop.permute.xlu0 %1035
    %v1038 = vsel %vm79, %v1036, 0
    %1040 = vmatprep.subr.bf16.mxu0 0
    %1041 = vmatpush1.bf16.msra.mxu0 %v70
    %1042 = vmatprep.subr.bf16.mxu0 0
    %1043 = vmatpush1.bf16.msra.mxu0 %v71
    %1044 = vmatprep.subr.bf16.mxu0 0
    %1045 = vmatpush1.bf16.msra.mxu0 0
    %1046 = vmatprep.subr.bf16.mxu0 0
    %1047 = vmatpush1.bf16.msra.mxu0 0
    %1048 = vmatprep.subr.bf16.mxu0 0
    %1049 = vmatpush1.bf16.msra.mxu0 0
    %1050 = vmatprep.subr.bf16.mxu0 0
    %1051 = vmatpush1.bf16.msra.mxu0 0
    %1052 = vmatprep.subr.bf16.mxu0 0
    %1053 = vmatpush1.bf16.msra.mxu0 0
    %1054 = vmatprep.subr.bf16.mxu0 0
    %1055 = vmatpush1.bf16.msra.mxu0 0
    %1056 = vmatprep.subr.bf16.mxu0 0
    %1057 = vmatpush1.bf16.msra.mxu0 0
    %1058 = vmatprep.subr.bf16.mxu0 0
    %1059 = vmatpush1.bf16.msra.mxu0 0
    %1060 = vmatprep.subr.bf16.mxu0 0
    %1061 = vmatpush1.bf16.msra.mxu0 0
    %1062 = vmatprep.subr.bf16.mxu0 0
    %1063 = vmatpush1.bf16.msra.mxu0 0
    %1064 = vmatprep.subr.bf16.mxu0 0
    %1065 = vmatpush1.bf16.msra.mxu0 0
    %1066 = vmatprep.subr.bf16.mxu0 0
    %1067 = vmatpush1.bf16.msra.mxu0 0
    %1068 = vmatprep.subr.bf16.mxu0 0
    %1069 = vmatpush1.bf16.msra.mxu0 0
    %1070 = vmatprep.subr.bf16.mxu0 0
    %1071 = vmatpush1.bf16.msra.mxu0 0
    %1072 = vmatprep.mubr.bf16.mxu0 0
    %1073 = vmatmul.mubr.bf16.gmra.mrb[0].mxu0 %v1038
    %v1074 = vpop.f32.mrb[0].mxu0
    %v1075 = vadd.f32 0.0, %v1074
    %v1076 = vpop.f32.mrb[0].mxu0
    %v1077 = vpop.f32.mrb[0].mxu0
    %v1078 = vpop.f32.mrb[0].mxu0
    %1079 = vdwg.mxu0
    %v1080 = vadd.f32 %v526, %v1075
    %v1081 = vxor.u32 %v1080, 2147483648
    %v1082 = vmul.f32 %v1081, 1.442695
    %v1083 = vpow.pop %v1082
    %v1084 = vadd.f32 %v1083, 1.0
    %v1085 = vrcp.pop %v1084
    %v1086 = vmul.f32 1.0, %v1085
    %v1087 = vtanh.pop %v1080
    %v1088 = vmul.f32 %v1086, %v1026
    %1090 = vrot.lane.b32.xlu0 %v1087, 64
    %v1091 = vpop.permute.xlu0 %1090
    %v1093 = vmul.f32 %v1086, %v1091
    %1095 = vrot.lane.b32.xlu0 %v1093, 32
    %v1096 = vpop.permute.xlu0 %1095
    %v1098 = vadd.f32 %v1088, %v1096
    %v1099 = vtanh.pop %v1098
    %1101 = vrot.lane.b32.xlu0 %v1099, 64
    %v1102 = vpop.permute.xlu0 %1101
    %v1104 = vmul.f32 %v1086, %v1102
    %v1105 = vpack.c.bf16 %v1104, %v1104
    %1107 = vrot.lane.b32.xlu0 %v1105, 32
    %v1108 = vpop.permute.xlu0 %1107
    %v1110 = vsel %vm79, %v1108, 0
    %1112 = vmatprep.subr.bf16.mxu0 0
    %1113 = vmatpush1.bf16.msra.mxu0 %v70
    %1114 = vmatprep.subr.bf16.mxu0 0
    %1115 = vmatpush1.bf16.msra.mxu0 %v71
    %1116 = vmatprep.subr.bf16.mxu0 0
    %1117 = vmatpush1.bf16.msra.mxu0 0
    %1118 = vmatprep.subr.bf16.mxu0 0
    %1119 = vmatpush1.bf16.msra.mxu0 0
    %1120 = vmatprep.subr.bf16.mxu0 0
    %1121 = vmatpush1.bf16.msra.mxu0 0
    %1122 = vmatprep.subr.bf16.mxu0 0
    %1123 = vmatpush1.bf16.msra.mxu0 0
    %1124 = vmatprep.subr.bf16.mxu0 0
    %1125 = vmatpush1.bf16.msra.mxu0 0
    %1126 = vmatprep.subr.bf16.mxu0 0
    %1127 = vmatpush1.bf16.msra.mxu0 0
    %1128 = vmatprep.subr.bf16.mxu0 0
    %1129 = vmatpush1.bf16.msra.mxu0 0
    %1130 = vmatprep.subr.bf16.mxu0 0
    %1131 = vmatpush1.bf16.msra.mxu0 0
    %1132 = vmatprep.subr.bf16.mxu0 0
    %1133 = vmatpush1.bf16.msra.mxu0 0
    %1134 = vmatprep.subr.bf16.mxu0 0
    %1135 = vmatpush1.bf16.msra.mxu0 0
    %1136 = vmatprep.subr.bf16.mxu0 0
    %1137 = vmatpush1.bf16.msra.mxu0 0
    %1138 = vmatprep.subr.bf16.mxu0 0
    %1139 = vmatpush1.bf16.msra.mxu0 0
    %1140 = vmatprep.subr.bf16.mxu0 0
    %1141 = vmatpush1.bf16.msra.mxu0 0
    %1142 = vmatprep.subr.bf16.mxu0 0
    %1143 = vmatpush1.bf16.msra.mxu0 0
    %1144 = vmatprep.mubr.bf16.mxu0 0
    %1145 = vmatmul.mubr.bf16.gmra.mrb[0].mxu0 %v1110
    %v1146 = vpop.f32.mrb[0].mxu0
    %v1147 = vadd.f32 0.0, %v1146
    %v1148 = vpop.f32.mrb[0].mxu0
    %v1149 = vpop.f32.mrb[0].mxu0
    %v1150 = vpop.f32.mrb[0].mxu0
    %1151 = vdwg.mxu0
    %v1152 = vadd.f32 %v600, %v1147
    %v1153 = vxor.u32 %v1152, 2147483648
    %v1154 = vmul.f32 %v1153, 1.442695
    %v1155 = vpow.pop %v1154
    %v1156 = vadd.f32 %v1155, 1.0
    %v1157 = vrcp.pop %v1156
    %v1158 = vmul.f32 1.0, %v1157
    %v1159 = vtanh.pop %v1152
    %v1160 = vmul.f32 %v1158, %v1098
    %1162 = vrot.lane.b32.xlu0 %v1159, 64
    %v1163 = vpop.permute.xlu0 %1162
    %v1165 = vmul.f32 %v1158, %v1163
    %1167 = vrot.lane.b32.xlu0 %v1165, 32
    %v1168 = vpop.permute.xlu0 %1167
    %v1170 = vadd.f32 %v1160, %v1168
    %v1171 = vtanh.pop %v1170
    %1173 = vrot.lane.b32.xlu0 %v1171, 64
    %v1174 = vpop.permute.xlu0 %1173
    %v1176 = vmul.f32 %v1158, %v1174
    %v1177 = vpack.c.bf16 %v1176, %v1176
    %1179 = vrot.lane.b32.xlu0 %v1177, 32
    %v1180 = vpop.permute.xlu0 %1179
    %v1182 = vsel %vm79, %v1180, 0
    %1184 = vmatprep.subr.bf16.mxu0 0
    %1185 = vmatpush1.bf16.msra.mxu0 %v70
    %1186 = vmatprep.subr.bf16.mxu0 0
    %1187 = vmatpush1.bf16.msra.mxu0 %v71
    %1188 = vmatprep.subr.bf16.mxu0 0
    %1189 = vmatpush1.bf16.msra.mxu0 0
    %1190 = vmatprep.subr.bf16.mxu0 0
    %1191 = vmatpush1.bf16.msra.mxu0 0
    %1192 = vmatprep.subr.bf16.mxu0 0
    %1193 = vmatpush1.bf16.msra.mxu0 0
    %1194 = vmatprep.subr.bf16.mxu0 0
    %1195 = vmatpush1.bf16.msra.mxu0 0
    %1196 = vmatprep.subr.bf16.mxu0 0
    %1197 = vmatpush1.bf16.msra.mxu0 0
    %1198 = vmatprep.subr.bf16.mxu0 0
    %1199 = vmatpush1.bf16.msra.mxu0 0
    %1200 = vmatprep.subr.bf16.mxu0 0
    %1201 = vmatpush1.bf16.msra.mxu0 0
    %1202 = vmatprep.subr.bf16.mxu0 0
    %1203 = vmatpush1.bf16.msra.mxu0 0
    %1204 = vmatprep.subr.bf16.mxu0 0
    %1205 = vmatpush1.bf16.msra.mxu0 0
    %1206 = vmatprep.subr.bf16.mxu0 0
    %1207 = vmatpush1.bf16.msra.mxu0 0
    %1208 = vmatprep.subr.bf16.mxu0 0
    %1209 = vmatpush1.bf16.msra.mxu0 0
    %1210 = vmatprep.subr.bf16.mxu0 0
    %1211 = vmatpush1.bf16.msra.mxu0 0
    %1212 = vmatprep.subr.bf16.mxu0 0
    %1213 = vmatpush1.bf16.msra.mxu0 0
    %1214 = vmatprep.subr.bf16.mxu0 0
    %1215 = vmatpush1.bf16.msra.mxu0 0
    %1216 = vmatprep.mubr.bf16.mxu0 0
    %1217 = vmatmul.mubr.bf16.gmra.mrb[0].mxu0 %v1182
    %v1218 = vpop.f32.mrb[0].mxu0
    %v1219 = vadd.f32 0.0, %v1218
    %v1220 = vpop.f32.mrb[0].mxu0
    %v1221 = vpop.f32.mrb[0].mxu0
    %v1222 = vpop.f32.mrb[0].mxu0
    %1223 = vdwg.mxu0
    %v1224 = vadd.f32 %v674, %v1219
    %v1225 = vxor.u32 %v1224, 2147483648
    %v1226 = vmul.f32 %v1225, 1.442695
    %v1227 = vpow.pop %v1226
    %v1228 = vadd.f32 %v1227, 1.0
    %v1229 = vrcp.pop %v1228
    %v1230 = vmul.f32 1.0, %v1229
    %v1231 = vtanh.pop %v1224
    %v1232 = vmul.f32 %v1230, %v1170
    %1234 = vrot.lane.b32.xlu0 %v1231, 64
    %v1235 = vpop.permute.xlu0 %1234
    %v1237 = vmul.f32 %v1230, %v1235
    %1239 = vrot.lane.b32.xlu0 %v1237, 32
    %v1240 = vpop.permute.xlu0 %1239
    %v1242 = vadd.f32 %v1232, %v1240
    %v1243 = vtanh.pop %v1242
    %1245 = vrot.lane.b32.xlu0 %v1243, 64
    %v1246 = vpop.permute.xlu0 %1245
    %v1248 = vmul.f32 %v1230, %v1246
    %1250 = vrot.lane.b32.xlu0 %v744, 32
    %v1251 = vpop.permute.xlu0 %1250
    %1254 = vrot.lane.b32.xlu0 %v816, 64
    %v1255 = vpop.permute.xlu0 %1254
    %1258 = vrot.lane.b32.xlu0 %v888, 96
    %v1259 = vpop.permute.xlu0 %1258
    %1262 = vrot.lane.b32.xlu0 %v1032, 32
    %v1263 = vpop.permute.xlu0 %1262
    %1266 = vrot.lane.b32.xlu0 %v1104, 64
    %v1267 = vpop.permute.xlu0 %1266
    %1270 = vrot.lane.b32.xlu0 %v1176, 96
    %v1271 = vpop.permute.xlu0 %1270
    %v1273 = vsel %vm79, %v1251, %v1255
    %vm1274 = vcmask 523264
    %v1275 = vsel %vm1274, %v1273, %v1259
    %vm1276 = vcmask 785408
    %v1277 = vsel %vm1276, %v1275, %v960
    %v1278 = vsel %vm79, %v1263, %v1267
    %v1279 = vsel %vm1274, %v1278, %v1271
    %v1280 = vsel %vm1276, %v1279, %v1248
    %v1283 = vcombine.low %v1277, %v1280
    %v1285 = vunpack.c.l.s4 1983009808
    %v1286 = vunpack.c.0.s8 %v1285
    %v1287 = vlaneseq
    %v1288 = vshrl.u32 %v1287, 7
    %v1289 = vsub.s32 %v1286, %v1288
    %v1290 = vrot.slane %v1283, %v1289
    %1292 = vst [vmem:[#allocation8] sm:$0xf] %v1290
    %1294 = vrot.lane.b32.xlu0 %v1242, 96
    %v1295 = vpop.permute.xlu0 %1294
    %vm1297 = vcmask 254976
    %1298 = vst.msk [vmem:[#allocation9] sm:$0x3] %vm1297, %v1295
    // Predicated region
    $region30: #{tpu_custom_call.1} parent=1 // pred_check
      _
    $region31: #{tpu_custom_call.1} parent=1 // pred_check_branch
      %1300 = sbr.rel (0) target = $region33
    $region32: #{tpu_custom_call.1} parent=1 // pred_region
      %s1302 = ssub.s32 64, 64
      %1303 = vsyncadd [#allocation4], %s1302
      %s1305 = sshll.u32 [#allocation8], 4
      %s1306 = int_to_ptr.vmem [resolvable:$true] %s1305
      %1308 = dma.vmem_to_hbm [thread:$0]  %s1306, 64, %s4, [#allocation4]
    $region33: #{tpu_custom_call.1} parent=1 // pred_fallthru
      _
    // Predicated region
    $region34: #{tpu_custom_call.1} parent=1 // pred_check
      _
    $region35: #{tpu_custom_call.1} parent=1 // pred_check_branch
      %1310 = sbr.rel (0) target = $region37
    $region36: #{tpu_custom_call.1} parent=1 // pred_region
      %s1312 = ssub.s32 32, 32
      %1313 = vsyncadd [#allocation10], %s1312
      %s1315 = sshll.u32 [#allocation9], 4
      %s1316 = int_to_ptr.vmem [resolvable:$true] %s1315
      %1318 = dma.vmem_to_hbm [thread:$0]  %s1316, 32, %s5, [#allocation10]
    $region37: #{tpu_custom_call.1} parent=1 // pred_fallthru
      _
    // Predicated region
    $region38: #{tpu_custom_call.1} parent=1 // pred_check
      _
    $region39: #{tpu_custom_call.1} parent=1 // pred_check_branch
      %1320 = sbr.rel (0) target = $region41
    $region40: #{tpu_custom_call.1} parent=1 // pred_region
      %1321 = dma.done [#allocation4], 64
    $region41: #{tpu_custom_call.1} parent=1 // pred_fallthru
      _
    // Predicated region
    $region42: #{tpu_custom_call.1} parent=1 // pred_check
      _
    $region43: #{tpu_custom_call.1} parent=1 // pred_check_branch
      %1323 = sbr.rel (0) target = $region45
    $region44: #{tpu_custom_call.1} parent=1 // pred_region
      %1324 = dma.done [#allocation10], 32
    $region45: #{tpu_custom_call.1} parent=1 // pred_fallthru
      _
    %1325 = vsyncpa [#allocation3], 1
    %1326 = vsyncpa [#allocation6], 1
    %1327 = vsyncpa [#allocation4], 1
    %1328 = vsyncpa [#allocation10], 1

</llo_original>
